<compile_context>
chip_gen: v6e
topology: v6e:2x2x1
jax: 0.10.0
libtpu: 0.0.40
codegen_flags: <defaults>
</compile_context>

<pallas_src>
import functools

import jax
import jax.numpy as jnp
import numpy as np
from jax.experimental import pallas as pl
from jax.experimental.pallas import tpu as pltpu


_MASK_VALUE = -1e30  # finite "minus infinity": avoids NaN for fully-masked rows


# ----------------------------------------------------------------------------
# Optimized kernel: batch-blocked, fused output projection, [T, B, *] outputs.
# ----------------------------------------------------------------------------
def _attn_kernel_opt(len_ref,        # scalar-prefetch: [B] int32 (SMEM)
                     q2_ref,         # (bb*T, D)   flattened queries
                     mb_ref,         # (bb, S, D)  memory bank
                     w_in_t_ref,     # (D, D)      linear_in.weight.T
                     w_out_t_ref,    # (2D, D)     linear_out.weight.T
                     attn_h_ref,     # (T, bb, D)  f32, [T, B, D] layout
                     align_ref,      # (T, bb, S)  f32, [T, B, S] layout
                     *, block_batch):
    i = pl.program_id(0)
    bb = block_batch
    q2 = q2_ref[...]                               # (bb*T, D)
    tgt = q2.shape[0] // bb
    src = mb_ref.shape[1]

    # linear_in folded over the whole batch block: MXU M = bb*T.
    h_t2 = jnp.dot(q2, w_in_t_ref[...], preferred_element_type=jnp.float32)
    h_t2 = h_t2.astype(q2.dtype)

    c_blocks = []
    for b in range(bb):                            # static loop (unrolled)
        mb_b = mb_ref[b]                           # (S, D)
        h_b = h_t2[b * tgt:(b + 1) * tgt, :]       # (T, D)

        # scores = h_b @ mb_b^T  (contract on D; no explicit transpose of mb_b)
        scores = jax.lax.dot_general(
            h_b, mb_b,
            dimension_numbers=(((1,), (1,)), ((), ())),
            preferred_element_type=jnp.float32)    # (T, S) f32

        col = jax.lax.broadcasted_iota(jnp.int32, (tgt, src), 1)
        scores = jnp.where(col < len_ref[i * bb + b], scores, _MASK_VALUE)

        # masked softmax over S; exp + approx reciprocal run on the EUP, one
        # Newton step on the tiny (T, 1) denominator restores ~f32 accuracy.
        m = jnp.max(scores, axis=-1, keepdims=True)
        p = jnp.exp(scores - m)
        denom = jnp.sum(p, axis=-1, keepdims=True)
        inv = pl.reciprocal(denom, approx=True)
        inv = inv * (2.0 - denom * inv)
        align_b = p * inv                          # (T, S) f32

        # store directly in the module's [T, B, S] layout
        align_ref[:, b, :] = align_b.astype(align_ref.dtype)

        # context c_b = align_b @ memory_bank_b
        c_blocks.append(jnp.dot(align_b.astype(mb_b.dtype), mb_b,
                                preferred_element_type=jnp.float32))  # (T, D)

    # fused output projection, folded over the batch block:
    #   attn_h = tanh([c, q] @ linear_out.weight^T)
    c2 = jnp.concatenate(c_blocks, axis=0) if bb > 1 else c_blocks[0]  # (bb*T, D)
    cq = jnp.concatenate([c2.astype(q2.dtype), q2], axis=-1)           # (bb*T, 2D)
    out2 = jnp.tanh(jnp.dot(cq, w_out_t_ref[...],
                            preferred_element_type=jnp.float32))       # (bb*T, D)
    for b in range(bb):
        attn_h_ref[:, b, :] = out2[b * tgt:(b + 1) * tgt, :].astype(attn_h_ref.dtype)


# ----------------------------------------------------------------------------
# Conservative fallback kernel (previously validated structure).
# ----------------------------------------------------------------------------
def _attn_kernel_safe(len_ref,      # scalar-prefetch: [B] int32 (SMEM)
                      src_ref,      # (1, T, D)
                      mb_ref,       # (1, S, D)
                      w_in_t_ref,   # (D, D)
                      w_c_t_ref,    # (D, D)  linear_out.weight[:, :D].T
                      w_s_t_ref,    # (D, D)  linear_out.weight[:, D:].T
                      attn_h_ref,   # (1, T, D)
                      align_ref):   # (1, T, S)
    b = pl.program_id(0)
    q = src_ref[0]
    mb = mb_ref[0]
    tgt = q.shape[0]
    src = mb.shape[0]

    h_t = jnp.dot(q, w_in_t_ref[...], preferred_element_type=jnp.float32)
    scores = jax.lax.dot_general(
        h_t.astype(q.dtype), mb,
        dimension_numbers=(((1,), (1,)), ((), ())),
        preferred_element_type=jnp.float32)

    col = jax.lax.broadcasted_iota(jnp.int32, (tgt, src), 1)
    scores = jnp.where(col < len_ref[b], scores, _MASK_VALUE)

    m = jnp.max(scores, axis=-1, keepdims=True)
    p = jnp.exp(scores - m)
    align = p / jnp.sum(p, axis=-1, keepdims=True)
    align_ref[0] = align.astype(align_ref.dtype)

    c = jnp.dot(align.astype(mb.dtype), mb, preferred_element_type=jnp.float32)
    out = (jnp.dot(c.astype(q.dtype), w_c_t_ref[...],
                   preferred_element_type=jnp.float32)
           + jnp.dot(q, w_s_t_ref[...], preferred_element_type=jnp.float32))
    attn_h_ref[0] = jnp.tanh(out).astype(attn_h_ref.dtype)


# ----------------------------------------------------------------------------
# Block-size / VMEM heuristics.
# ----------------------------------------------------------------------------
def _block_vmem_bytes(bb, tgt, src, dim, in_bytes, weight_buffers=1):
    act_in = bb * (tgt + src) * dim * in_bytes            # q2 + mb blocks
    act_out = bb * tgt * (dim + src) * 4                  # f32 output blocks
    weights = 3 * dim * dim * in_bytes                    # (D,D) + (2D,D)
    return 2 * (act_in + act_out) + weight_buffers * weights


def _choose_block_batch(batch, tgt, src, dim, in_bytes, budget=44 << 20):
    # legal block-batch sizes: divide `batch` and be either the full batch or a
    # multiple of 8 (sublane constraint on the transposed (T, bb, *) outputs).
    cands = [b for b in range(1, batch + 1)
             if batch % b == 0 and (b == batch or b % 8 == 0)]
    feasible = [b for b in cands
                if _block_vmem_bytes(b, tgt, src, dim, in_bytes) <= budget]
    if not feasible:
        feasible = [min(cands)]
    multi = [b for b in feasible if batch // b >= 2]      # >=2 grid steps keeps
    pool = multi if multi else feasible                   # both v7x TCs busy
    return max(pool)


# ----------------------------------------------------------------------------
# Wrapper.
# ----------------------------------------------------------------------------
def global_attention(source, memory_bank, memory_lengths, w_in, w_out,
                     *, compute_dtype=jnp.bfloat16, block_batch=None):
    """GlobalAttention forward (attn_type='general', no bias, no coverage/rk).

    source: [B, T, D], memory_bank: [B, S, D], memory_lengths: [B] int.
    w_in:  linear_in.weight  [D, D]
    w_out: linear_out.weight [D, 2D]
    Returns (attn_h [T, B, D], align [T, B, S]) as float32.
    """
    batch, tgt, dim = source.shape
    _, src, _ = memory_bank.shape
    assert w_in.shape == (dim, dim)
    assert w_out.shape == (dim, 2 * dim)

    cdt = jnp.dtype(compute_dtype)
    in_bytes = cdt.itemsize

    # MXU operands in `compute_dtype` (bf16 by default), f32 accumulation.
    src_c = source.astype(cdt)
    mb_c = memory_bank.astype(cdt)
    w_in_t = w_in.T.astype(cdt)                    # nn.Linear computes x @ W^T
    w_out_t = w_out.T.astype(cdt)                  # (2D, D); rows [0:D]->c, [D:2D]->q
    lens = memory_lengths.astype(jnp.int32)

    bb = (_choose_block_batch(batch, tgt, src, dim, in_bytes)
          if block_batch is None else int(block_batch))
    assert batch % bb == 0 and (bb == batch or bb % 8 == 0), (batch, bb)
    grid = (batch // bb,)

    vmem_limit = int(min(max(_block_vmem_bytes(bb, tgt, src, dim, in_bytes)
                             + (8 << 20), 32 << 20), 60 << 20))
    cparams = pltpu.CompilerParams(dimension_semantics=("parallel",),
                                   vmem_limit_bytes=vmem_limit)

    # ---- optimized path: batch-blocked, fused, [T, B, *] outputs ------------
    def run_optimized():
        q2 = src_c.reshape(batch * tgt, dim)       # free row-major reshape
        grid_spec = pltpu.PrefetchScalarGridSpec(
            num_scalar_prefetch=1,
            grid=grid,
            in_specs=[
                pl.BlockSpec((bb * tgt, dim), lambda i, L: (i, 0)),
                pl.BlockSpec((bb, src, dim), lambda i, L: (i, 0, 0)),
                pl.BlockSpec((dim, dim), lambda i, L: (0, 0),
                             pipeline_mode=pl.Buffered(1)),
                pl.BlockSpec((2 * dim, dim), lambda i, L: (0, 0),
                             pipeline_mode=pl.Buffered(1)),
            ],
            out_specs=[
                pl.BlockSpec((tgt, bb, dim), lambda i, L: (0, i, 0)),
                pl.BlockSpec((tgt, bb, src), lambda i, L: (0, i, 0)),
            ],
        )
        fn = pl.pallas_call(
            functools.partial(_attn_kernel_opt, block_batch=bb),
            out_shape=(jax.ShapeDtypeStruct((tgt, batch, dim), jnp.float32),
                       jax.ShapeDtypeStruct((tgt, batch, src), jnp.float32)),
            grid_spec=grid_spec,
            compiler_params=cparams,
        )
        attn_h, align = fn(lens, q2, mb_c, w_in_t, w_out_t)
        return jax.block_until_ready((attn_h, align))

    # ---- conservative fallback: per-batch grid, batch-major outputs ---------
    def run_safe():
        w_c_t = w_out[:, :dim].T.astype(cdt)
        w_s_t = w_out[:, dim:].T.astype(cdt)
        grid_spec = pltpu.PrefetchScalarGridSpec(
            num_scalar_prefetch=1,
            grid=(batch,),
            in_specs=[
                pl.BlockSpec((1, tgt, dim), lambda b, L: (b, 0, 0)),
                pl.BlockSpec((1, src, dim), lambda b, L: (b, 0, 0)),
                pl.BlockSpec((dim, dim), lambda b, L: (0, 0)),
                pl.BlockSpec((dim, dim), lambda b, L: (0, 0)),
                pl.BlockSpec((dim, dim), lambda b, L: (0, 0)),
            ],
            out_specs=[
                pl.BlockSpec((1, tgt, dim), lambda b, L: (b, 0, 0)),
                pl.BlockSpec((1, tgt, src), lambda b, L: (b, 0, 0)),
            ],
        )
        fn = pl.pallas_call(
            _attn_kernel_safe,
            out_shape=(jax.ShapeDtypeStruct((batch, tgt, dim), jnp.float32),
                       jax.ShapeDtypeStruct((batch, tgt, src), jnp.float32)),
            grid_spec=grid_spec,
            compiler_params=cparams,
        )
        attn_h, align = fn(lens, src_c, mb_c, w_in_t, w_c_t, w_s_t)
        # layout fix-up by XLA (extra HBM pass; the optimized path avoids it)
        return jnp.transpose(attn_h, (1, 0, 2)), jnp.transpose(align, (1, 0, 2))

    try:
        return run_optimized()
    except Exception:  # toolchain-dependent lowering differences -> safe path
        return run_safe()


# ----------------------------------------------------------------------------
# Pure-JAX reference mirroring the PyTorch forward (optionally bf16-quantized).
# ----------------------------------------------------------------------------
def _reference(source, memory_bank, memory_lengths, w_in, w_out,
               compute_dtype=jnp.float32):
    cdt = jnp.dtype(compute_dtype)
    q = source.astype(cdt)
    mb = memory_bank.astype(cdt)
    w_in_t = w_in.T.astype(cdt)
    w_out_t = w_out.T.astype(cdt)
    h_t = jnp.einsum('btd,de->bte', q, w_in_t,
                     preferred_element_type=jnp.float32).astype(cdt)
    scores = jnp.einsum('btd,bsd->bts', h_t, mb,
                        preferred_element_type=jnp.float32)
    mask = (jnp.arange(memory_bank.shape[1])[None, None, :]
            < memory_lengths[:, None, None])
    scores = jnp.where(mask, scores, -jnp.inf)
    align = jax.nn.softmax(scores, axis=-1)
    c = jnp.einsum('bts,bsd->btd', align.astype(cdt), mb,
                   preferred_element_type=jnp.float32)
    cq = jnp.concatenate([c.astype(cdt), q], axis=-1)
    attn_h = jnp.tanh(jnp.einsum('btk,kd->btd', cq, w_out_t,
                                 preferred_element_type=jnp.float32))
    return attn_h.transpose(1, 0, 2), align.transpose(1, 0, 2)


if __name__ == "__main__":
    batch, tgt_len, src_len, dim = 2, 4, 8, 32

    key = jax.random.PRNGKey(0)
    k_src, k_mb, k_win, k_wout = jax.random.split(key, 4)

    source = jax.random.normal(k_src, (batch, tgt_len, dim), dtype=jnp.float32)
    memory_bank = jax.random.normal(k_mb, (batch, src_len, dim), dtype=jnp.float32)
    memory_lengths = jnp.array([src_len, 5], dtype=jnp.int32)

    # parameter shapes from __init__: linear_in [D, D], linear_out [D, 2D], no bias
    w_in = jax.random.normal(k_win, (dim, dim), dtype=jnp.float32) * (1.0 / np.sqrt(dim))
    w_out = jax.random.normal(k_wout, (dim, 2 * dim), dtype=jnp.float32) * (1.0 / np.sqrt(2 * dim))

    # 1) full-precision MXU path: tight check against the PyTorch-equivalent math
    attn_h, align = global_attention(source, memory_bank, memory_lengths,
                                     w_in, w_out, compute_dtype=jnp.float32)
    jax.block_until_ready((attn_h, align))
    ref_h, ref_a = _reference(source, memory_bank, memory_lengths, w_in, w_out,
                              jnp.float32)
    np.testing.assert_allclose(np.asarray(attn_h), np.asarray(ref_h),
                               rtol=2e-3, atol=2e-3)
    np.testing.assert_allclose(np.asarray(align), np.asarray(ref_a),
                               rtol=2e-3, atol=2e-3)

    # 2) default bf16-operand MXU path (f32 accumulation): check against the
    #    bf16-quantized reference
    attn_h16, align16 = global_attention(source, memory_bank, memory_lengths,
                                         w_in, w_out)
    jax.block_until_ready((attn_h16, align16))
    ref_h16, ref_a16 = _reference(source, memory_bank, memory_lengths,
                                  w_in, w_out, jnp.bfloat16)
    np.testing.assert_allclose(np.asarray(attn_h16), np.asarray(ref_h16),
                               rtol=1e-2, atol=1e-2)
    np.testing.assert_allclose(np.asarray(align16), np.asarray(ref_a16),
                               rtol=1e-2, atol=1e-2)

    print("KERNEL_OK")
</pallas_src>

<mosaic_0001>
module attributes {stable_mosaic.version = 11 : i64} {
  func.func @_attn_kernel_opt(%arg0: i32, %arg1: memref<2xi32, #tpu.memory_space<smem>>, %arg2: memref<8x32xf32, #tpu.memory_space<vmem>>, %arg3: memref<2x8x32xf32, #tpu.memory_space<vmem>>, %arg4: memref<32x32xf32, #tpu.memory_space<vmem>>, %arg5: memref<64x32xf32, #tpu.memory_space<vmem>>, %arg6: memref<4x2x32xf32, #tpu.memory_space<vmem>>, %arg7: memref<4x2x8xf32, #tpu.memory_space<vmem>>) attributes {dimension_semantics = [#tpu.dimension_semantics<parallel>], iteration_bounds = array<i64: 1>, scalar_prefetch = 1 : i64, scratch_operands = 0 : i64, tpu.core_type = #tpu.core_type<tc>, window_params = [{transform_indices = @transform_0, window_bounds = array<i64: 8, 32>}, {transform_indices = @transform_1, window_bounds = array<i64: 2, 8, 32>}, {pipeline_mode = #tpu.pipeline_mode<synchronous>, transform_indices = @transform_2, window_bounds = array<i64: 32, 32>}, {pipeline_mode = #tpu.pipeline_mode<synchronous>, transform_indices = @transform_3, window_bounds = array<i64: 64, 32>}, {transform_indices = @transform_4, window_bounds = array<i64: 4, 2, 32>}, {transform_indices = @transform_5, window_bounds = array<i64: 4, 2, 8>}]} {
    %c0 = arith.constant 0 : index
    %c0_0 = arith.constant 0 : index
    %0 = vector.load %arg2[%c0, %c0_0] : memref<8x32xf32, #tpu.memory_space<vmem>>, vector<8x32xf32>
    %c0_1 = arith.constant 0 : index
    %c0_2 = arith.constant 0 : index
    %1 = vector.load %arg4[%c0_1, %c0_2] : memref<32x32xf32, #tpu.memory_space<vmem>>, vector<32x32xf32>
    %cst = arith.constant dense<0.000000e+00> : vector<8x32xf32>
    %2 = tpu.matmul %0, %1, %cst {dimension_numbers = #tpu.dot_dimension_numbers<[1], [0], [0], [1], [0, 0, 1, 1], [], []>} : vector<8x32xf32>, vector<32x32xf32>, vector<8x32xf32> -> vector<8x32xf32>
    %c0_3 = arith.constant 0 : index
    %c0_4 = arith.constant 0 : index
    %c0_5 = arith.constant 0 : index
    %3 = vector.load %arg3[%c0_3, %c0_4, %c0_5] : memref<2x8x32xf32, #tpu.memory_space<vmem>>, vector<1x8x32xf32>
    %4 = vector.shape_cast %3 : vector<1x8x32xf32> to vector<8x32xf32>
    %5 = vector.extract_strided_slice %2 {offsets = [0, 0], sizes = [4, 32], strides = [1, 1]} : vector<8x32xf32> to vector<4x32xf32>
    %cst_6 = arith.constant dense<0.000000e+00> : vector<4x8xf32>
    %6 = tpu.matmul %5, %4, %cst_6 {dimension_numbers = #tpu.dot_dimension_numbers<[1], [1], [0], [0], [0, 0, 1, 0], [], []>} : vector<4x32xf32>, vector<8x32xf32>, vector<4x8xf32> -> vector<4x8xf32>
    %7 = tpu.iota {dimensions = array<i32: 1>} : vector<4x8xi32>
    %c2_i32 = arith.constant 2 : i32
    %8 = arith.muli %arg0, %c2_i32 : i32
    %c0_i32 = arith.constant 0 : i32
    %9 = arith.addi %8, %c0_i32 : i32
    %10 = arith.index_cast %9 : i32 to index
    %11 = memref.load %arg1[%10] : memref<2xi32, #tpu.memory_space<smem>>
    %12 = vector.broadcast %11 : i32 to vector<4x8xi32>
    %13 = arith.cmpi slt, %7, %12 : vector<4x8xi32>
    %cst_7 = arith.constant -1.000000e+30 : f32
    %14 = vector.broadcast %cst_7 : f32 to vector<4x8xf32>
    %15 = arith.select %13, %6, %14 : vector<4x8xi1>, vector<4x8xf32>
    %cst_8 = arith.constant dense<0xFF800000> : vector<4xf32>
    %16 = vector.multi_reduction <maximumf>, %15, %cst_8 [1] : vector<4x8xf32> to vector<4xf32>
    %17 = vector.shape_cast %16 : vector<4xf32> to vector<4x1xf32>
    %18 = vector.broadcast %17 : vector<4x1xf32> to vector<4x8xf32>
    %19 = arith.subf %15, %18 : vector<4x8xf32>
    %20 = math.exp %19 : vector<4x8xf32>
    %cst_9 = arith.constant dense<0.000000e+00> : vector<4xf32>
    %21 = vector.multi_reduction <add>, %20, %cst_9 [1] : vector<4x8xf32> to vector<4xf32>
    %22 = vector.shape_cast %21 : vector<4xf32> to vector<4x1xf32>
    %23 = tpu.reciprocal %22 {approx = true} : vector<4x1xf32> -> vector<4x1xf32>
    %24 = arith.mulf %22, %23 : vector<4x1xf32>
    %cst_10 = arith.constant 2.000000e+00 : f32
    %25 = vector.broadcast %cst_10 : f32 to vector<4x1xf32>
    %26 = arith.subf %25, %24 : vector<4x1xf32>
    %27 = arith.mulf %23, %26 : vector<4x1xf32>
    %28 = vector.broadcast %27 : vector<4x1xf32> to vector<4x8xf32>
    %29 = arith.mulf %20, %28 : vector<4x8xf32>
    %c0_11 = arith.constant 0 : index
    %c0_12 = arith.constant 0 : index
    %c0_13 = arith.constant 0 : index
    %30 = vector.load %arg7[%c0_11, %c0_12, %c0_13] : memref<4x2x8xf32, #tpu.memory_space<vmem>>, vector<4x1x8xf32>
    %31 = vector.shape_cast %30 : vector<4x1x8xf32> to vector<4x8xf32>
    %32 = vector.shape_cast %29 : vector<4x8xf32> to vector<4x1x8xf32>
    tpu.vector_store %arg7[%c0_11, %c0_12, %c0_13], %32 {strides = array<i32>} : memref<4x2x8xf32, #tpu.memory_space<vmem>>, vector<4x1x8xf32>,
    %cst_14 = arith.constant dense<0.000000e+00> : vector<4x32xf32>
    %33 = tpu.matmul %29, %4, %cst_14 {dimension_numbers = #tpu.dot_dimension_numbers<[1], [0], [0], [1], [0, 0, 1, 1], [], []>} : vector<4x8xf32>, vector<8x32xf32>, vector<4x32xf32> -> vector<4x32xf32>
    %c1 = arith.constant 1 : index
    %c0_15 = arith.constant 0 : index
    %c0_16 = arith.constant 0 : index
    %34 = vector.load %arg3[%c1, %c0_15, %c0_16] : memref<2x8x32xf32, #tpu.memory_space<vmem>>, vector<1x8x32xf32>
    %35 = vector.shape_cast %34 : vector<1x8x32xf32> to vector<8x32xf32>
    %36 = vector.extract_strided_slice %2 {offsets = [4, 0], sizes = [4, 32], strides = [1, 1]} : vector<8x32xf32> to vector<4x32xf32>
    %cst_17 = arith.constant dense<0.000000e+00> : vector<4x8xf32>
    %37 = tpu.matmul %36, %35, %cst_17 {dimension_numbers = #tpu.dot_dimension_numbers<[1], [1], [0], [0], [0, 0, 1, 0], [], []>} : vector<4x32xf32>, vector<8x32xf32>, vector<4x8xf32> -> vector<4x8xf32>
    %38 = tpu.iota {dimensions = array<i32: 1>} : vector<4x8xi32>
    %c2_i32_18 = arith.constant 2 : i32
    %39 = arith.muli %arg0, %c2_i32_18 : i32
    %c1_i32 = arith.constant 1 : i32
    %40 = arith.addi %39, %c1_i32 : i32
    %41 = arith.index_cast %40 : i32 to index
    %42 = memref.load %arg1[%41] : memref<2xi32, #tpu.memory_space<smem>>
    %43 = vector.broadcast %42 : i32 to vector<4x8xi32>
    %44 = arith.cmpi slt, %38, %43 : vector<4x8xi32>
    %cst_19 = arith.constant -1.000000e+30 : f32
    %45 = vector.broadcast %cst_19 : f32 to vector<4x8xf32>
    %46 = arith.select %44, %37, %45 : vector<4x8xi1>, vector<4x8xf32>
    %cst_20 = arith.constant dense<0xFF800000> : vector<4xf32>
    %47 = vector.multi_reduction <maximumf>, %46, %cst_20 [1] : vector<4x8xf32> to vector<4xf32>
    %48 = vector.shape_cast %47 : vector<4xf32> to vector<4x1xf32>
    %49 = vector.broadcast %48 : vector<4x1xf32> to vector<4x8xf32>
    %50 = arith.subf %46, %49 : vector<4x8xf32>
    %51 = math.exp %50 : vector<4x8xf32>
    %cst_21 = arith.constant dense<0.000000e+00> : vector<4xf32>
    %52 = vector.multi_reduction <add>, %51, %cst_21 [1] : vector<4x8xf32> to vector<4xf32>
    %53 = vector.shape_cast %52 : vector<4xf32> to vector<4x1xf32>
    %54 = tpu.reciprocal %53 {approx = true} : vector<4x1xf32> -> vector<4x1xf32>
    %55 = arith.mulf %53, %54 : vector<4x1xf32>
    %cst_22 = arith.constant 2.000000e+00 : f32
    %56 = vector.broadcast %cst_22 : f32 to vector<4x1xf32>
    %57 = arith.subf %56, %55 : vector<4x1xf32>
    %58 = arith.mulf %54, %57 : vector<4x1xf32>
    %59 = vector.broadcast %58 : vector<4x1xf32> to vector<4x8xf32>
    %60 = arith.mulf %51, %59 : vector<4x8xf32>
    %c0_23 = arith.constant 0 : index
    %c1_24 = arith.constant 1 : index
    %c0_25 = arith.constant 0 : index
    %61 = vector.load %arg7[%c0_23, %c1_24, %c0_25] : memref<4x2x8xf32, #tpu.memory_space<vmem>>, vector<4x1x8xf32>
    %62 = vector.shape_cast %61 : vector<4x1x8xf32> to vector<4x8xf32>
    %63 = vector.shape_cast %60 : vector<4x8xf32> to vector<4x1x8xf32>
    tpu.vector_store %arg7[%c0_23, %c1_24, %c0_25], %63 {strides = array<i32>} : memref<4x2x8xf32, #tpu.memory_space<vmem>>, vector<4x1x8xf32>,
    %cst_26 = arith.constant dense<0.000000e+00> : vector<4x32xf32>
    %64 = tpu.matmul %60, %35, %cst_26 {dimension_numbers = #tpu.dot_dimension_numbers<[1], [0], [0], [1], [0, 0, 1, 1], [], []>} : vector<4x8xf32>, vector<8x32xf32>, vector<4x32xf32> -> vector<4x32xf32>
    %65 = tpu.concatenate %33, %64 in 0 : vector<4x32xf32>, vector<4x32xf32> -> vector<8x32xf32>
    %66 = tpu.concatenate %65, %0 in 1 : vector<8x32xf32>, vector<8x32xf32> -> vector<8x64xf32>
    %c0_27 = arith.constant 0 : index
    %c0_28 = arith.constant 0 : index
    %67 = vector.load %arg5[%c0_27, %c0_28] : memref<64x32xf32, #tpu.memory_space<vmem>>, vector<64x32xf32>
    %cst_29 = arith.constant dense<0.000000e+00> : vector<8x32xf32>
    %68 = tpu.matmul %66, %67, %cst_29 {dimension_numbers = #tpu.dot_dimension_numbers<[1], [0], [0], [1], [0, 0, 1, 1], [], []>} : vector<8x64xf32>, vector<64x32xf32>, vector<8x32xf32> -> vector<8x32xf32>
    %69 = math.tanh %68 : vector<8x32xf32>
    %70 = vector.extract_strided_slice %69 {offsets = [0, 0], sizes = [4, 32], strides = [1, 1]} : vector<8x32xf32> to vector<4x32xf32>
    %c0_30 = arith.constant 0 : index
    %c0_31 = arith.constant 0 : index
    %c0_32 = arith.constant 0 : index
    %71 = vector.load %arg6[%c0_30, %c0_31, %c0_32] : memref<4x2x32xf32, #tpu.memory_space<vmem>>, vector<4x1x32xf32>
    %72 = vector.shape_cast %71 : vector<4x1x32xf32> to vector<4x32xf32>
    %73 = vector.shape_cast %70 : vector<4x32xf32> to vector<4x1x32xf32>
    tpu.vector_store %arg6[%c0_30, %c0_31, %c0_32], %73 {strides = array<i32>} : memref<4x2x32xf32, #tpu.memory_space<vmem>>, vector<4x1x32xf32>,
    %74 = vector.extract_strided_slice %69 {offsets = [4, 0], sizes = [4, 32], strides = [1, 1]} : vector<8x32xf32> to vector<4x32xf32>
    %c0_33 = arith.constant 0 : index
    %c1_34 = arith.constant 1 : index
    %c0_35 = arith.constant 0 : index
    %75 = vector.load %arg6[%c0_33, %c1_34, %c0_35] : memref<4x2x32xf32, #tpu.memory_space<vmem>>, vector<4x1x32xf32>
    %76 = vector.shape_cast %75 : vector<4x1x32xf32> to vector<4x32xf32>
    %77 = vector.shape_cast %74 : vector<4x32xf32> to vector<4x1x32xf32>
    tpu.vector_store %arg6[%c0_33, %c1_34, %c0_35], %77 {strides = array<i32>} : memref<4x2x32xf32, #tpu.memory_space<vmem>>, vector<4x1x32xf32>,
    return
  }
  func.func @transform_0(%arg0: i32, %arg1: memref<2xi32, #tpu.memory_space<smem>>) -> (i32, i32) {
    %c0_i32 = arith.constant 0 : i32
    %c0_i32_0 = arith.constant 0 : i32
    return %arg0, %c0_i32 : i32, i32
  }
  func.func @transform_1(%arg0: i32, %arg1: memref<2xi32, #tpu.memory_space<smem>>) -> (i32, i32, i32) {
    %c0_i32 = arith.constant 0 : i32
    %c0_i32_0 = arith.constant 0 : i32
    %c0_i32_1 = arith.constant 0 : i32
    return %arg0, %c0_i32, %c0_i32_0 : i32, i32, i32
  }
  func.func @transform_2(%arg0: i32, %arg1: memref<2xi32, #tpu.memory_space<smem>>) -> (i32, i32) {
    %c0_i32 = arith.constant 0 : i32
    %c0_i32_0 = arith.constant 0 : i32
    %c0_i32_1 = arith.constant 0 : i32
    return %c0_i32, %c0_i32_0 : i32, i32
  }
  func.func @transform_3(%arg0: i32, %arg1: memref<2xi32, #tpu.memory_space<smem>>) -> (i32, i32) {
    %c0_i32 = arith.constant 0 : i32
    %c0_i32_0 = arith.constant 0 : i32
    %c0_i32_1 = arith.constant 0 : i32
    return %c0_i32, %c0_i32_0 : i32, i32
  }
  func.func @transform_4(%arg0: i32, %arg1: memref<2xi32, #tpu.memory_space<smem>>) -> (i32, i32, i32) {
    %c0_i32 = arith.constant 0 : i32
    %c0_i32_0 = arith.constant 0 : i32
    %c0_i32_1 = arith.constant 0 : i32
    return %c0_i32, %arg0, %c0_i32_0 : i32, i32, i32
  }
  func.func @transform_5(%arg0: i32, %arg1: memref<2xi32, #tpu.memory_space<smem>>) -> (i32, i32, i32) {
    %c0_i32 = arith.constant 0 : i32
    %c0_i32_0 = arith.constant 0 : i32
    %c0_i32_1 = arith.constant 0 : i32
    return %c0_i32, %arg0, %c0_i32_0 : i32, i32, i32
  }
}

module attributes {stable_mosaic.version = 11 : i64} {
  func.func @_attn_kernel_safe(%arg0: i32, %arg1: memref<2xi32, #tpu.memory_space<smem>>, %arg2: memref<1x4x32xf32, #tpu.memory_space<vmem>>, %arg3: memref<1x8x32xf32, #tpu.memory_space<vmem>>, %arg4: memref<32x32xf32, #tpu.memory_space<vmem>>, %arg5: memref<32x32xf32, #tpu.memory_space<vmem>>, %arg6: memref<32x32xf32, #tpu.memory_space<vmem>>, %arg7: memref<1x4x32xf32, #tpu.memory_space<vmem>>, %arg8: memref<1x4x8xf32, #tpu.memory_space<vmem>>) attributes {dimension_semantics = [#tpu.dimension_semantics<parallel>], iteration_bounds = array<i64: 2>, scalar_prefetch = 1 : i64, scratch_operands = 0 : i64, tpu.core_type = #tpu.core_type<tc>, window_params = [{transform_indices = @transform_0, window_bounds = array<i64: 1, 4, 32>}, {transform_indices = @transform_1, window_bounds = array<i64: 1, 8, 32>}, {pipeline_mode = #tpu.pipeline_mode<synchronous>, transform_indices = @transform_2, window_bounds = array<i64: 32, 32>}, {pipeline_mode = #tpu.pipeline_mode<synchronous>, transform_indices = @transform_3, window_bounds = array<i64: 32, 32>}, {pipeline_mode = #tpu.pipeline_mode<synchronous>, transform_indices = @transform_4, window_bounds = array<i64: 32, 32>}, {transform_indices = @transform_5, window_bounds = array<i64: 1, 4, 32>}, {transform_indices = @transform_6, window_bounds = array<i64: 1, 4, 8>}]} {
    %c0 = arith.constant 0 : index
    %c0_0 = arith.constant 0 : index
    %c0_1 = arith.constant 0 : index
    %0 = vector.load %arg2[%c0, %c0_0, %c0_1] : memref<1x4x32xf32, #tpu.memory_space<vmem>>, vector<1x4x32xf32>
    %1 = vector.shape_cast %0 : vector<1x4x32xf32> to vector<4x32xf32>
    %c0_2 = arith.constant 0 : index
    %c0_3 = arith.constant 0 : index
    %c0_4 = arith.constant 0 : index
    %2 = vector.load %arg3[%c0_2, %c0_3, %c0_4] : memref<1x8x32xf32, #tpu.memory_space<vmem>>, vector<1x8x32xf32>
    %3 = vector.shape_cast %2 : vector<1x8x32xf32> to vector<8x32xf32>
    %c0_5 = arith.constant 0 : index
    %c0_6 = arith.constant 0 : index
    %4 = vector.load %arg4[%c0_5, %c0_6] : memref<32x32xf32, #tpu.memory_space<vmem>>, vector<32x32xf32>
    %cst = arith.constant dense<0.000000e+00> : vector<4x32xf32>
    %5 = tpu.matmul %1, %4, %cst {dimension_numbers = #tpu.dot_dimension_numbers<[1], [0], [0], [1], [0, 0, 1, 1], [], []>} : vector<4x32xf32>, vector<32x32xf32>, vector<4x32xf32> -> vector<4x32xf32>
    %cst_7 = arith.constant dense<0.000000e+00> : vector<4x8xf32>
    %6 = tpu.matmul %5, %3, %cst_7 {dimension_numbers = #tpu.dot_dimension_numbers<[1], [1], [0], [0], [0, 0, 1, 0], [], []>} : vector<4x32xf32>, vector<8x32xf32>, vector<4x8xf32> -> vector<4x8xf32>
    %7 = tpu.iota {dimensions = array<i32: 1>} : vector<4x8xi32>
    %8 = arith.index_cast %arg0 : i32 to index
    %9 = memref.load %arg1[%8] : memref<2xi32, #tpu.memory_space<smem>>
    %10 = vector.broadcast %9 : i32 to vector<4x8xi32>
    %11 = arith.cmpi slt, %7, %10 : vector<4x8xi32>
    %cst_8 = arith.constant -1.000000e+30 : f32
    %12 = vector.broadcast %cst_8 : f32 to vector<4x8xf32>
    %13 = arith.select %11, %6, %12 : vector<4x8xi1>, vector<4x8xf32>
    %cst_9 = arith.constant dense<0xFF800000> : vector<4xf32>
    %14 = vector.multi_reduction <maximumf>, %13, %cst_9 [1] : vector<4x8xf32> to vector<4xf32>
    %15 = vector.shape_cast %14 : vector<4xf32> to vector<4x1xf32>
    %16 = vector.broadcast %15 : vector<4x1xf32> to vector<4x8xf32>
    %17 = arith.subf %13, %16 : vector<4x8xf32>
    %18 = math.exp %17 : vector<4x8xf32>
    %cst_10 = arith.constant dense<0.000000e+00> : vector<4xf32>
    %19 = vector.multi_reduction <add>, %18, %cst_10 [1] : vector<4x8xf32> to vector<4xf32>
    %20 = vector.shape_cast %19 : vector<4xf32> to vector<4x1xf32>
    %21 = vector.broadcast %20 : vector<4x1xf32> to vector<4x8xf32>
    %22 = arith.divf %18, %21 : vector<4x8xf32>
    %c0_11 = arith.constant 0 : index
    %c0_12 = arith.constant 0 : index
    %c0_13 = arith.constant 0 : index
    %23 = vector.load %arg8[%c0_11, %c0_12, %c0_13] : memref<1x4x8xf32, #tpu.memory_space<vmem>>, vector<1x4x8xf32>
    %24 = vector.shape_cast %23 : vector<1x4x8xf32> to vector<4x8xf32>
    %25 = vector.shape_cast %22 : vector<4x8xf32> to vector<1x4x8xf32>
    tpu.vector_store %arg8[%c0_11, %c0_12, %c0_13], %25 {strides = array<i32>} : memref<1x4x8xf32, #tpu.memory_space<vmem>>, vector<1x4x8xf32>,
    %cst_14 = arith.constant dense<0.000000e+00> : vector<4x32xf32>
    %26 = tpu.matmul %22, %3, %cst_14 {dimension_numbers = #tpu.dot_dimension_numbers<[1], [0], [0], [1], [0, 0, 1, 1], [], []>} : vector<4x8xf32>, vector<8x32xf32>, vector<4x32xf32> -> vector<4x32xf32>
    %c0_15 = arith.constant 0 : index
    %c0_16 = arith.constant 0 : index
    %27 = vector.load %arg5[%c0_15, %c0_16] : memref<32x32xf32, #tpu.memory_space<vmem>>, vector<32x32xf32>
    %cst_17 = arith.constant dense<0.000000e+00> : vector<4x32xf32>
    %28 = tpu.matmul %26, %27, %cst_17 {dimension_numbers = #tpu.dot_dimension_numbers<[1], [0], [0], [1], [0, 0, 1, 1], [], []>} : vector<4x32xf32>, vector<32x32xf32>, vector<4x32xf32> -> vector<4x32xf32>
    %c0_18 = arith.constant 0 : index
    %c0_19 = arith.constant 0 : index
    %29 = vector.load %arg6[%c0_18, %c0_19] : memref<32x32xf32, #tpu.memory_space<vmem>>, vector<32x32xf32>
    %cst_20 = arith.constant dense<0.000000e+00> : vector<4x32xf32>
    %30 = tpu.matmul %1, %29, %cst_20 {dimension_numbers = #tpu.dot_dimension_numbers<[1], [0], [0], [1], [0, 0, 1, 1], [], []>} : vector<4x32xf32>, vector<32x32xf32>, vector<4x32xf32> -> vector<4x32xf32>
    %31 = arith.addf %28, %30 : vector<4x32xf32>
    %32 = math.tanh %31 : vector<4x32xf32>
    %c0_21 = arith.constant 0 : index
    %c0_22 = arith.constant 0 : index
    %c0_23 = arith.constant 0 : index
    %33 = vector.load %arg7[%c0_21, %c0_22, %c0_23] : memref<1x4x32xf32, #tpu.memory_space<vmem>>, vector<1x4x32xf32>
    %34 = vector.shape_cast %33 : vector<1x4x32xf32> to vector<4x32xf32>
    %35 = vector.shape_cast %32 : vector<4x32xf32> to vector<1x4x32xf32>
    tpu.vector_store %arg7[%c0_21, %c0_22, %c0_23], %35 {strides = array<i32>} : memref<1x4x32xf32, #tpu.memory_space<vmem>>, vector<1x4x32xf32>,
    return
  }
  func.func @transform_0(%arg0: i32, %arg1: memref<2xi32, #tpu.memory_space<smem>>) -> (i32, i32, i32) {
    %c0_i32 = arith.constant 0 : i32
    %c0_i32_0 = arith.constant 0 : i32
    %c0_i32_1 = arith.constant 0 : i32
    return %arg0, %c0_i32, %c0_i32_0 : i32, i32, i32
  }
  func.func @transform_1(%arg0: i32, %arg1: memref<2xi32, #tpu.memory_space<smem>>) -> (i32, i32, i32) {
    %c0_i32 = arith.constant 0 : i32
    %c0_i32_0 = arith.constant 0 : i32
    %c0_i32_1 = arith.constant 0 : i32
    return %arg0, %c0_i32, %c0_i32_0 : i32, i32, i32
  }
  func.func @transform_2(%arg0: i32, %arg1: memref<2xi32, #tpu.memory_space<smem>>) -> (i32, i32) {
    %c0_i32 = arith.constant 0 : i32
    %c0_i32_0 = arith.constant 0 : i32
    %c0_i32_1 = arith.constant 0 : i32
    return %c0_i32, %c0_i32_0 : i32, i32
  }
  func.func @transform_3(%arg0: i32, %arg1: memref<2xi32, #tpu.memory_space<smem>>) -> (i32, i32) {
    %c0_i32 = arith.constant 0 : i32
    %c0_i32_0 = arith.constant 0 : i32
    %c0_i32_1 = arith.constant 0 : i32
    return %c0_i32, %c0_i32_0 : i32, i32
  }
  func.func @transform_4(%arg0: i32, %arg1: memref<2xi32, #tpu.memory_space<smem>>) -> (i32, i32) {
    %c0_i32 = arith.constant 0 : i32
    %c0_i32_0 = arith.constant 0 : i32
    %c0_i32_1 = arith.constant 0 : i32
    return %c0_i32, %c0_i32_0 : i32, i32
  }
  func.func @transform_5(%arg0: i32, %arg1: memref<2xi32, #tpu.memory_space<smem>>) -> (i32, i32, i32) {
    %c0_i32 = arith.constant 0 : i32
    %c0_i32_0 = arith.constant 0 : i32
    %c0_i32_1 = arith.constant 0 : i32
    return %arg0, %c0_i32, %c0_i32_0 : i32, i32, i32
  }
  func.func @transform_6(%arg0: i32, %arg1: memref<2xi32, #tpu.memory_space<smem>>) -> (i32, i32, i32) {
    %c0_i32 = arith.constant 0 : i32
    %c0_i32_0 = arith.constant 0 : i32
    %c0_i32_1 = arith.constant 0 : i32
    return %arg0, %c0_i32, %c0_i32_0 : i32, i32, i32
  }
}

</mosaic_0001>

<llo_original>
// kernel: tpu_custom_call.1
$region0: #{tpu_custom_call.1}
  #allocation0 [shape = 'u32[]', space=smem, size = 0x4, offset = 0x4, fixed_abs, tag = 'smem constant byte address 0x4 - core index']
  #allocation1 [shape = 'u32[144,128]{1,0:T(1,128)}', space=vmem, size = 0x12000, scoped, tag = 'internal scratch']
  #allocation2 [shape = 's32[1]{0}', space=sflag, size = 0x4, scoped, tag = 'scoped memory for tpu_custom_call.1']
  #allocation3 [shape = 'u8[512]{0}', space=smem, size = 0x200, scoped, tag = 'prefetched SMEM operand 0']
  %s0 = inlined_call_operand.vmem [shape: s32[2], index: 0, kind: input, shape index: {}]
  %s1 = inlined_call_operand.vmem [shape: f32[8,32], index: 1, kind: input, shape index: {}]
  %s2 = inlined_call_operand.vmem [shape: f32[2,8,32], index: 2, kind: input, shape index: {}]
  %s3 = inlined_call_operand.vmem [shape: f32[32,32], index: 3, kind: input, shape index: {}]
  %s4 = inlined_call_operand.vmem [shape: f32[64,32], index: 4, kind: input, shape index: {}]
  %s5 = inlined_call_operand.hbm [shape: f32[4,2,32], index: 5, kind: output, shape index: {0}]
  %s6 = inlined_call_operand.hbm [shape: f32[4,2,8], index: 6, kind: output, shape index: {1}]
  %7 = xla_tuple %s5, %s6
  %s8 = sld [smem:[#allocation0]]
  $region34: #{tpu_custom_call.1} parent=0
    _
  %s10 = ssub.s32 1, %s8
  %s11 = scalar_select 0, %s10, %s8
  %s12 = sshll.u32 %s0, 4
  %s13 = int_to_ptr.vmem [resolvable:$true] %s12
  %15 = dma.vmem_to_smem %s13, 16, [#allocation3], [#allocation2]
  %16 = dma.done [#allocation2], 16
  %17 = sfence
  $region1: #{tpu_custom_call.1} parent=0
    #allocation4 [shape = 'u8[4096]{0}', space=vmem, size = 0x1000, scoped, tag = 'output window, operand 0, single buffered']
    #allocation5 [shape = 's32[1]{0}', space=sflag, size = 0x4, scoped, tag = 'scoped memory for tpu_custom_call.1']
    #allocation6 [shape = 'u8[4096]{0}', space=vmem, size = 0x1000, scoped, tag = 'output window, operand 1, single buffered']
    #allocation7 [shape = 's32[1]{0}', space=sflag, size = 0x4, scoped, tag = 'scoped memory for tpu_custom_call.1']
    %18 = vsyncpa [#allocation5], 0
    %19 = vsyncpa [#allocation7], 0
    // Predicated region
    $region2: #{tpu_custom_call.1} parent=1 // pred_check
      _
    $region3: #{tpu_custom_call.1} parent=1 // pred_check_branch
      %21 = sbr.rel (0) target = $region5
    $region4: #{tpu_custom_call.1} parent=1 // pred_region
      _
    $region5: #{tpu_custom_call.1} parent=1 // pred_fallthru
      _
    // Predicated region
    $region6: #{tpu_custom_call.1} parent=1 // pred_check
      _
    $region7: #{tpu_custom_call.1} parent=1 // pred_check_branch
      %23 = sbr.rel (0) target = $region9
    $region8: #{tpu_custom_call.1} parent=1 // pred_region
      _
    $region9: #{tpu_custom_call.1} parent=1 // pred_fallthru
      _
    // Predicated region
    $region10: #{tpu_custom_call.1} parent=1 // pred_check
      _
    $region11: #{tpu_custom_call.1} parent=1 // pred_check_branch
      %25 = sbr.rel (0) target = $region13
    $region12: #{tpu_custom_call.1} parent=1 // pred_region
      _
    $region13: #{tpu_custom_call.1} parent=1 // pred_fallthru
      _
    // Predicated region
    $region14: #{tpu_custom_call.1} parent=1 // pred_check
      _
    $region15: #{tpu_custom_call.1} parent=1 // pred_check_branch
      %27 = sbr.rel (0) target = $region17
    $region16: #{tpu_custom_call.1} parent=1 // pred_region
      _
    $region17: #{tpu_custom_call.1} parent=1 // pred_fallthru
      _
    %v28 = vld [vmem:[%s1] sm:$0xff]
    %v29 = vld [vmem:[%s3] sm:$0xff]
    %v30 = vld [vmem:[%s3 + $0x8] sm:$0xff]
    %v31 = vld [vmem:[%s3 + $0x10] sm:$0xff]
    %v32 = vld [vmem:[%s3 + $0x18] sm:$0xff]
    %vm33 = vcmask 261120
    %v35 = vsel %vm33, %v28, 0
    %37 = vmatprep.subr.mxu0 0.0
    %38 = vmatpush1.msra.mxu0 0.0
    %39 = vmatprep.subr.mxu0 0.0
    %40 = vmatpush1.msra.mxu0 0.0
    %41 = vmatprep.subr.mxu0 0.0
    %42 = vmatpush1.msra.mxu0 0.0
    %43 = vmatprep.subr.mxu0 0.0
    %44 = vmatpush1.msra.mxu0 0.0
    %45 = vmatprep.subr.mxu0 0.0
    %46 = vmatpush1.msra.mxu0 0.0
    %47 = vmatprep.subr.mxu0 0.0
    %48 = vmatpush1.msra.mxu0 0.0
    %49 = vmatprep.subr.mxu0 0.0
    %50 = vmatpush1.msra.mxu0 0.0
    %51 = vmatprep.subr.mxu0 0.0
    %52 = vmatpush1.msra.mxu0 0.0
    %53 = vmatprep.subr.mxu0 0.0
    %54 = vmatpush1.msra.mxu0 0.0
    %55 = vmatprep.subr.mxu0 0.0
    %56 = vmatpush1.msra.mxu0 0.0
    %57 = vmatprep.subr.mxu0 0.0
    %58 = vmatpush1.msra.mxu0 0.0
    %59 = vmatprep.subr.mxu0 0.0
    %60 = vmatpush1.msra.mxu0 0.0
    %61 = vmatprep.subr.mxu0 0.0
    %62 = vmatpush1.msra.mxu0 %v32
    %63 = vmatprep.subr.mxu0 0.0
    %64 = vmatpush1.msra.mxu0 %v31
    %65 = vmatprep.subr.mxu0 0.0
    %66 = vmatpush1.msra.mxu0 %v30
    %67 = vmatprep.subr.mxu0 0.0
    %68 = vmatpush1.msra.mxu0 %v29
    %69 = vmatprep.subr.mxu0 0.0
    %70 = vmatpush2.msra.mxu0 0.0
    %71 = vmatprep.subr.mxu0 0.0
    %72 = vmatpush2.msra.mxu0 0.0
    %73 = vmatprep.subr.mxu0 0.0
    %74 = vmatpush2.msra.mxu0 0.0
    %75 = vmatprep.subr.mxu0 0.0
    %76 = vmatpush2.msra.mxu0 0.0
    %77 = vmatprep.subr.mxu0 0.0
    %78 = vmatpush2.msra.mxu0 0.0
    %79 = vmatprep.subr.mxu0 0.0
    %80 = vmatpush2.msra.mxu0 0.0
    %81 = vmatprep.subr.mxu0 0.0
    %82 = vmatpush2.msra.mxu0 0.0
    %83 = vmatprep.subr.mxu0 0.0
    %84 = vmatpush2.msra.mxu0 0.0
    %85 = vmatprep.subr.mxu0 0.0
    %86 = vmatpush2.msra.mxu0 0.0
    %87 = vmatprep.subr.mxu0 0.0
    %88 = vmatpush2.msra.mxu0 0.0
    %89 = vmatprep.subr.mxu0 0.0
    %90 = vmatpush2.msra.mxu0 0.0
    %91 = vmatprep.subr.mxu0 0.0
    %92 = vmatpush2.msra.mxu0 0.0
    %93 = vmatprep.subr.mxu0 0.0
    %94 = vmatpush2.msra.mxu0 0.0
    %95 = vmatprep.subr.mxu0 0.0
    %96 = vmatpush2.msra.mxu0 0.0
    %97 = vmatprep.subr.mxu0 0.0
    %98 = vmatpush2.msra.mxu0 0.0
    %99 = vmatprep.subr.mxu0 0.0
    %100 = vmatpush2.msra.mxu0 0.0
    %101 = vmatprep.mubr.f32.mxu0 0.0
    %102 = vmatmul.mubr.f32.gmra.mxu0 %v35
    %v103 = vpop.f32.mrf.mxu0
    %v104 = vadd.f32 0.0, %v103
    %v105 = vpop.f32.mrf.mxu0
    %106 = vdwg.mxu0
    %v107 = vld [vmem:[%s2] sm:$0xff]
    %v109 = vsel %vm33, %v104, 0
    %v112 = vsel %vm33, %v107, 0
    %114 = vmatprep.subr.mxu0 0.0
    %115 = vmatpush1.xpose.msra.mxu0 0.0
    %116 = vmatprep.subr.mxu0 0.0
    %117 = vmatpush1.xpose.msra.mxu0 0.0
    %118 = vmatprep.subr.mxu0 0.0
    %119 = vmatpush1.xpose.msra.mxu0 0.0
    %120 = vmatprep.subr.mxu0 0.0
    %121 = vmatpush1.xpose.msra.mxu0 0.0
    %122 = vmatprep.subr.mxu0 0.0
    %123 = vmatpush1.xpose.msra.mxu0 0.0
    %124 = vmatprep.subr.mxu0 0.0
    %125 = vmatpush1.xpose.msra.mxu0 0.0
    %126 = vmatprep.subr.mxu0 0.0
    %127 = vmatpush1.xpose.msra.mxu0 0.0
    %128 = vmatprep.subr.mxu0 0.0
    %129 = vmatpush1.xpose.msra.mxu0 0.0
    %130 = vmatprep.subr.mxu0 0.0
    %131 = vmatpush1.xpose.msra.mxu0 0.0
    %132 = vmatprep.subr.mxu0 0.0
    %133 = vmatpush1.xpose.msra.mxu0 0.0
    %134 = vmatprep.subr.mxu0 0.0
    %135 = vmatpush1.xpose.msra.mxu0 0.0
    %136 = vmatprep.subr.mxu0 0.0
    %137 = vmatpush1.xpose.msra.mxu0 0.0
    %138 = vmatprep.subr.mxu0 0.0
    %139 = vmatpush1.xpose.msra.mxu0 0.0
    %140 = vmatprep.subr.mxu0 0.0
    %141 = vmatpush1.xpose.msra.mxu0 0.0
    %142 = vmatprep.subr.mxu0 0.0
    %143 = vmatpush1.xpose.msra.mxu0 0.0
    %144 = vmatprep.subr.mxu0 0.0
    %145 = vmatpush1.xpose.msra.mxu0 %v112
    %146 = vmatprep.subr.mxu0 0.0
    %147 = vmatpush2.xpose.msra.mxu0 0.0
    %148 = vmatprep.subr.mxu0 0.0
    %149 = vmatpush2.xpose.msra.mxu0 0.0
    %150 = vmatprep.subr.mxu0 0.0
    %151 = vmatpush2.xpose.msra.mxu0 0.0
    %152 = vmatprep.subr.mxu0 0.0
    %153 = vmatpush2.xpose.msra.mxu0 0.0
    %154 = vmatprep.subr.mxu0 0.0
    %155 = vmatpush2.xpose.msra.mxu0 0.0
    %156 = vmatprep.subr.mxu0 0.0
    %157 = vmatpush2.xpose.msra.mxu0 0.0
    %158 = vmatprep.subr.mxu0 0.0
    %159 = vmatpush2.xpose.msra.mxu0 0.0
    %160 = vmatprep.subr.mxu0 0.0
    %161 = vmatpush2.xpose.msra.mxu0 0.0
    %162 = vmatprep.subr.mxu0 0.0
    %163 = vmatpush2.xpose.msra.mxu0 0.0
    %164 = vmatprep.subr.mxu0 0.0
    %165 = vmatpush2.xpose.msra.mxu0 0.0
    %166 = vmatprep.subr.mxu0 0.0
    %167 = vmatpush2.xpose.msra.mxu0 0.0
    %168 = vmatprep.subr.mxu0 0.0
    %169 = vmatpush2.xpose.msra.mxu0 0.0
    %170 = vmatprep.subr.mxu0 0.0
    %171 = vmatpush2.xpose.msra.mxu0 0.0
    %172 = vmatprep.subr.mxu0 0.0
    %173 = vmatpush2.xpose.msra.mxu0 0.0
    %174 = vmatprep.subr.mxu0 0.0
    %175 = vmatpush2.xpose.msra.mxu0 0.0
    %176 = vmatprep.subr.mxu0 0.0
    %177 = vmatpush2.xpose.msra.mxu0 0.0
    %178 = vmatprep.mubr.f32.mxu0 0.0
    %179 = vmatmul.mubr.f32.gmra.mxu0 %v109
    %v180 = vpop.f32.mrf.mxu0
    %v181 = vadd.f32 0.0, %v180
    %v182 = vpop.f32.mrf.mxu0
    %183 = vdwg.mxu0
    %v184 = vlaneseq
    %v185 = vand.u32 %v184, 127
    %s186 = smul.u32 0, 2
    %s187 = sld [smem:[#allocation3 + %s186]]
    %v188 = vstv %s187
    %vm189 = vcmp.lt.s32.totalorder %v185, %v188
    %v190 = vsel %vm189, %v181, -1e+30
    %vm191 = vcmask 60416
    %v192 = vsel %vm191, %v190, -inf
    %193 = vmax.xlane.f32.xlu0 %v192
    %v194 = vpop.xlane.xlu0 %193
    %v195 = vsub.f32 %v190, %v194
    %v196 = vmul.f32 %v195, 1.442695
    %v197 = vpow.pop %v196
    %v198 = vsel %vm191, %v197, 0.0
    %199 = vadd.xlane.f32.xlu0 %v198
    %v200 = vpop.xlane.xlu0 %199
    %v201 = vrcp.pop %v200
    %v202 = vmul.f32 %v200, %v201
    %v203 = vsub.f32 2.0, %v202
    %v204 = vmul.f32 %v201, %v203
    %v205 = vmul.f32 %v197, %v204
    %v208 = vunpack.c.l.s4 1966171168
    %v209 = vunpack.c.0.s8 %v208
    %v210 = vlaneseq
    %v211 = vshrl.u32 %v210, 7
    %v212 = vsub.s32 %v209, %v211
    %v213 = vrot.slane %v205, %v212
    %v214 = vcombine.high %v213, %v213
    %v216 = vunpack.c.l.s4 1966171168
    %v217 = vunpack.c.0.s8 %v216
    %v218 = vlaneseq
    %v219 = vshrl.u32 %v218, 7
    %v220 = vsub.s32 %v217, %v219
    %v221 = vrot.slane %v213, %v220
    %v223 = vunpack.c.l.s4 1966171168
    %v224 = vunpack.c.0.s8 %v223
    %v225 = vlaneseq
    %v226 = vshrl.u32 %v225, 7
    %v227 = vsub.s32 %v224, %v226
    %v228 = vrot.slane %v214, %v227
    %v229 = vcombine.high %v221, %v221
    %v230 = vcombine.high %v228, %v228
    %vm235 = vcmask 57344
    %236 = vst.msk [vmem:[#allocation6] sm:$0x1] %vm235, %v221
    %237 = vst.msk [vmem:[#allocation6 + $0x2] sm:$0x1] %vm235, %v228
    %238 = vst.msk [vmem:[#allocation6 + $0x4] sm:$0x1] %vm235, %v229
    %239 = vst.msk [vmem:[#allocation6 + $0x6] sm:$0x1] %vm235, %v230
    %vm240 = vcmask 64512
    %v241 = vsel %vm240, %v205, 0
    %243 = vmatprep.subr.mxu0 0.0
    %244 = vmatpush1.msra.mxu0 0.0
    %245 = vmatprep.subr.mxu0 0.0
    %246 = vmatpush1.msra.mxu0 0.0
    %247 = vmatprep.subr.mxu0 0.0
    %248 = vmatpush1.msra.mxu0 0.0
    %249 = vmatprep.subr.mxu0 0.0
    %250 = vmatpush1.msra.mxu0 0.0
    %251 = vmatprep.subr.mxu0 0.0
    %252 = vmatpush1.msra.mxu0 0.0
    %253 = vmatprep.subr.mxu0 0.0
    %254 = vmatpush1.msra.mxu0 0.0
    %255 = vmatprep.subr.mxu0 0.0
    %256 = vmatpush1.msra.mxu0 0.0
    %257 = vmatprep.subr.mxu0 0.0
    %258 = vmatpush1.msra.mxu0 0.0
    %259 = vmatprep.subr.mxu0 0.0
    %260 = vmatpush1.msra.mxu0 0.0
    %261 = vmatprep.subr.mxu0 0.0
    %262 = vmatpush1.msra.mxu0 0.0
    %263 = vmatprep.subr.mxu0 0.0
    %264 = vmatpush1.msra.mxu0 0.0
    %265 = vmatprep.subr.mxu0 0.0
    %266 = vmatpush1.msra.mxu0 0.0
    %267 = vmatprep.subr.mxu0 0.0
    %268 = vmatpush1.msra.mxu0 0.0
    %269 = vmatprep.subr.mxu0 0.0
    %270 = vmatpush1.msra.mxu0 0.0
    %271 = vmatprep.subr.mxu0 0.0
    %272 = vmatpush1.msra.mxu0 0.0
    %273 = vmatprep.subr.mxu0 0.0
    %274 = vmatpush1.msra.mxu0 %v107
    %275 = vmatprep.subr.mxu0 0.0
    %276 = vmatpush2.msra.mxu0 0.0
    %277 = vmatprep.subr.mxu0 0.0
    %278 = vmatpush2.msra.mxu0 0.0
    %279 = vmatprep.subr.mxu0 0.0
    %280 = vmatpush2.msra.mxu0 0.0
    %281 = vmatprep.subr.mxu0 0.0
    %282 = vmatpush2.msra.mxu0 0.0
    %283 = vmatprep.subr.mxu0 0.0
    %284 = vmatpush2.msra.mxu0 0.0
    %285 = vmatprep.subr.mxu0 0.0
    %286 = vmatpush2.msra.mxu0 0.0
    %287 = vmatprep.subr.mxu0 0.0
    %288 = vmatpush2.msra.mxu0 0.0
    %289 = vmatprep.subr.mxu0 0.0
    %290 = vmatpush2.msra.mxu0 0.0
    %291 = vmatprep.subr.mxu0 0.0
    %292 = vmatpush2.msra.mxu0 0.0
    %293 = vmatprep.subr.mxu0 0.0
    %294 = vmatpush2.msra.mxu0 0.0
    %295 = vmatprep.subr.mxu0 0.0
    %296 = vmatpush2.msra.mxu0 0.0
    %297 = vmatprep.subr.mxu0 0.0
    %298 = vmatpush2.msra.mxu0 0.0
    %299 = vmatprep.subr.mxu0 0.0
    %300 = vmatpush2.msra.mxu0 0.0
    %301 = vmatprep.subr.mxu0 0.0
    %302 = vmatpush2.msra.mxu0 0.0
    %303 = vmatprep.subr.mxu0 0.0
    %304 = vmatpush2.msra.mxu0 0.0
    %305 = vmatprep.subr.mxu0 0.0
    %306 = vmatpush2.msra.mxu0 0.0
    %307 = vmatprep.mubr.f32.mxu0 0.0
    %308 = vmatmul.mubr.f32.gmra.mxu0 %v241
    %v309 = vpop.f32.mrf.mxu0
    %v310 = vadd.f32 0.0, %v309
    %v311 = vpop.f32.mrf.mxu0
    %312 = vdwg.mxu0
    %s313 = scalar_lea.vmem %s2, 8
    %v314 = vld [vmem:[%s313] sm:$0xff]
    %v315 = vrot.slane %v104, 4
    %v316 = vsel %vm33, %v315, 0
    %v319 = vsel %vm33, %v314, 0
    %321 = vmatprep.subr.mxu0 0.0
    %322 = vmatpush1.xpose.msra.mxu0 0.0
    %323 = vmatprep.subr.mxu0 0.0
    %324 = vmatpush1.xpose.msra.mxu0 0.0
    %325 = vmatprep.subr.mxu0 0.0
    %326 = vmatpush1.xpose.msra.mxu0 0.0
    %327 = vmatprep.subr.mxu0 0.0
    %328 = vmatpush1.xpose.msra.mxu0 0.0
    %329 = vmatprep.subr.mxu0 0.0
    %330 = vmatpush1.xpose.msra.mxu0 0.0
    %331 = vmatprep.subr.mxu0 0.0
    %332 = vmatpush1.xpose.msra.mxu0 0.0
    %333 = vmatprep.subr.mxu0 0.0
    %334 = vmatpush1.xpose.msra.mxu0 0.0
    %335 = vmatprep.subr.mxu0 0.0
    %336 = vmatpush1.xpose.msra.mxu0 0.0
    %337 = vmatprep.subr.mxu0 0.0
    %338 = vmatpush1.xpose.msra.mxu0 0.0
    %339 = vmatprep.subr.mxu0 0.0
    %340 = vmatpush1.xpose.msra.mxu0 0.0
    %341 = vmatprep.subr.mxu0 0.0
    %342 = vmatpush1.xpose.msra.mxu0 0.0
    %343 = vmatprep.subr.mxu0 0.0
    %344 = vmatpush1.xpose.msra.mxu0 0.0
    %345 = vmatprep.subr.mxu0 0.0
    %346 = vmatpush1.xpose.msra.mxu0 0.0
    %347 = vmatprep.subr.mxu0 0.0
    %348 = vmatpush1.xpose.msra.mxu0 0.0
    %349 = vmatprep.subr.mxu0 0.0
    %350 = vmatpush1.xpose.msra.mxu0 0.0
    %351 = vmatprep.subr.mxu0 0.0
    %352 = vmatpush1.xpose.msra.mxu0 %v319
    %353 = vmatprep.subr.mxu0 0.0
    %354 = vmatpush2.xpose.msra.mxu0 0.0
    %355 = vmatprep.subr.mxu0 0.0
    %356 = vmatpush2.xpose.msra.mxu0 0.0
    %357 = vmatprep.subr.mxu0 0.0
    %358 = vmatpush2.xpose.msra.mxu0 0.0
    %359 = vmatprep.subr.mxu0 0.0
    %360 = vmatpush2.xpose.msra.mxu0 0.0
    %361 = vmatprep.subr.mxu0 0.0
    %362 = vmatpush2.xpose.msra.mxu0 0.0
    %363 = vmatprep.subr.mxu0 0.0
    %364 = vmatpush2.xpose.msra.mxu0 0.0
    %365 = vmatprep.subr.mxu0 0.0
    %366 = vmatpush2.xpose.msra.mxu0 0.0
    %367 = vmatprep.subr.mxu0 0.0
    %368 = vmatpush2.xpose.msra.mxu0 0.0
    %369 = vmatprep.subr.mxu0 0.0
    %370 = vmatpush2.xpose.msra.mxu0 0.0
    %371 = vmatprep.subr.mxu0 0.0
    %372 = vmatpush2.xpose.msra.mxu0 0.0
    %373 = vmatprep.subr.mxu0 0.0
    %374 = vmatpush2.xpose.msra.mxu0 0.0
    %375 = vmatprep.subr.mxu0 0.0
    %376 = vmatpush2.xpose.msra.mxu0 0.0
    %377 = vmatprep.subr.mxu0 0.0
    %378 = vmatpush2.xpose.msra.mxu0 0.0
    %379 = vmatprep.subr.mxu0 0.0
    %380 = vmatpush2.xpose.msra.mxu0 0.0
    %381 = vmatprep.subr.mxu0 0.0
    %382 = vmatpush2.xpose.msra.mxu0 0.0
    %383 = vmatprep.subr.mxu0 0.0
    %384 = vmatpush2.xpose.msra.mxu0 0.0
    %385 = vmatprep.mubr.f32.mxu0 0.0
    %386 = vmatmul.mubr.f32.gmra.mxu0 %v316
    %v387 = vpop.f32.mrf.mxu0
    %v388 = vadd.f32 0.0, %v387
    %v389 = vpop.f32.mrf.mxu0
    %390 = vdwg.mxu0
    %s391 = sadd.s32 %s186, 1
    %s392 = sld [smem:[#allocation3 + %s391]]
    %v393 = vstv %s392
    %vm394 = vcmp.lt.s32.totalorder %v185, %v393
    %v395 = vsel %vm394, %v388, -1e+30
    %v396 = vsel %vm191, %v395, -inf
    %397 = vmax.xlane.f32.xlu0 %v396
    %v398 = vpop.xlane.xlu0 %397
    %v399 = vsub.f32 %v395, %v398
    %v400 = vmul.f32 %v399, 1.442695
    %v401 = vpow.pop %v400
    %v402 = vsel %vm191, %v401, 0.0
    %403 = vadd.xlane.f32.xlu0 %v402
    %v404 = vpop.xlane.xlu0 %403
    %v405 = vrcp.pop %v404
    %v406 = vmul.f32 %v404, %v405
    %v407 = vsub.f32 2.0, %v406
    %v408 = vmul.f32 %v405, %v407
    %v409 = vmul.f32 %v401, %v408
    %v412 = vunpack.c.l.s4 1966171168
    %v413 = vunpack.c.0.s8 %v412
    %v414 = vlaneseq
    %v415 = vshrl.u32 %v414, 7
    %v416 = vsub.s32 %v413, %v415
    %v417 = vrot.slane %v409, %v416
    %v418 = vcombine.high %v417, %v417
    %v420 = vunpack.c.l.s4 1966171168
    %v421 = vunpack.c.0.s8 %v420
    %v422 = vlaneseq
    %v423 = vshrl.u32 %v422, 7
    %v424 = vsub.s32 %v421, %v423
    %v425 = vrot.slane %v417, %v424
    %v427 = vunpack.c.l.s4 1966171168
    %v428 = vunpack.c.0.s8 %v427
    %v429 = vlaneseq
    %v430 = vshrl.u32 %v429, 7
    %v431 = vsub.s32 %v428, %v430
    %v432 = vrot.slane %v418, %v431
    %v433 = vcombine.high %v425, %v425
    %v434 = vcombine.high %v432, %v432
    %439 = vst.msk [vmem:[#allocation6 + $0x1] sm:$0x1] %vm235, %v425
    %440 = vst.msk [vmem:[#allocation6 + $0x3] sm:$0x1] %vm235, %v432
    %441 = vst.msk [vmem:[#allocation6 + $0x5] sm:$0x1] %vm235, %v433
    %442 = vst.msk [vmem:[#allocation6 + $0x7] sm:$0x1] %vm235, %v434
    %v443 = vsel %vm240, %v409, 0
    %445 = vmatprep.subr.mxu0 0.0
    %446 = vmatpush1.msra.mxu0 0.0
    %447 = vmatprep.subr.mxu0 0.0
    %448 = vmatpush1.msra.mxu0 0.0
    %449 = vmatprep.subr.mxu0 0.0
    %450 = vmatpush1.msra.mxu0 0.0
    %451 = vmatprep.subr.mxu0 0.0
    %452 = vmatpush1.msra.mxu0 0.0
    %453 = vmatprep.subr.mxu0 0.0
    %454 = vmatpush1.msra.mxu0 0.0
    %455 = vmatprep.subr.mxu0 0.0
    %456 = vmatpush1.msra.mxu0 0.0
    %457 = vmatprep.subr.mxu0 0.0
    %458 = vmatpush1.msra.mxu0 0.0
    %459 = vmatprep.subr.mxu0 0.0
    %460 = vmatpush1.msra.mxu0 0.0
    %461 = vmatprep.subr.mxu0 0.0
    %462 = vmatpush1.msra.mxu0 0.0
    %463 = vmatprep.subr.mxu0 0.0
    %464 = vmatpush1.msra.mxu0 0.0
    %465 = vmatprep.subr.mxu0 0.0
    %466 = vmatpush1.msra.mxu0 0.0
    %467 = vmatprep.subr.mxu0 0.0
    %468 = vmatpush1.msra.mxu0 0.0
    %469 = vmatprep.subr.mxu0 0.0
    %470 = vmatpush1.msra.mxu0 0.0
    %471 = vmatprep.subr.mxu0 0.0
    %472 = vmatpush1.msra.mxu0 0.0
    %473 = vmatprep.subr.mxu0 0.0
    %474 = vmatpush1.msra.mxu0 0.0
    %475 = vmatprep.subr.mxu0 0.0
    %476 = vmatpush1.msra.mxu0 %v314
    %477 = vmatprep.subr.mxu0 0.0
    %478 = vmatpush2.msra.mxu0 0.0
    %479 = vmatprep.subr.mxu0 0.0
    %480 = vmatpush2.msra.mxu0 0.0
    %481 = vmatprep.subr.mxu0 0.0
    %482 = vmatpush2.msra.mxu0 0.0
    %483 = vmatprep.subr.mxu0 0.0
    %484 = vmatpush2.msra.mxu0 0.0
    %485 = vmatprep.subr.mxu0 0.0
    %486 = vmatpush2.msra.mxu0 0.0
    %487 = vmatprep.subr.mxu0 0.0
    %488 = vmatpush2.msra.mxu0 0.0
    %489 = vmatprep.subr.mxu0 0.0
    %490 = vmatpush2.msra.mxu0 0.0
    %491 = vmatprep.subr.mxu0 0.0
    %492 = vmatpush2.msra.mxu0 0.0
    %493 = vmatprep.subr.mxu0 0.0
    %494 = vmatpush2.msra.mxu0 0.0
    %495 = vmatprep.subr.mxu0 0.0
    %496 = vmatpush2.msra.mxu0 0.0
    %497 = vmatprep.subr.mxu0 0.0
    %498 = vmatpush2.msra.mxu0 0.0
    %499 = vmatprep.subr.mxu0 0.0
    %500 = vmatpush2.msra.mxu0 0.0
    %501 = vmatprep.subr.mxu0 0.0
    %502 = vmatpush2.msra.mxu0 0.0
    %503 = vmatprep.subr.mxu0 0.0
    %504 = vmatpush2.msra.mxu0 0.0
    %505 = vmatprep.subr.mxu0 0.0
    %506 = vmatpush2.msra.mxu0 0.0
    %507 = vmatprep.subr.mxu0 0.0
    %508 = vmatpush2.msra.mxu0 0.0
    %509 = vmatprep.mubr.f32.mxu0 0.0
    %510 = vmatmul.mubr.f32.gmra.mxu0 %v443
    %v511 = vpop.f32.mrf.mxu0
    %v512 = vadd.f32 0.0, %v511
    %v513 = vpop.f32.mrf.mxu0
    %514 = vdwg.mxu0
    %v516 = vrot.slane %v512, 4
    %vm518 = vcmask 1043456
    %v519 = vsel %vm518, %v310, %v516
    %520 = vrot.lane.b32.xlu0 %v28, 32
    %v521 = vpop.permute.xlu0 %520
    %v523 = vsel %vm33, %v519, %v521
    %v524 = vld [vmem:[%s4] sm:$0xff]
    %v525 = vld [vmem:[%s4 + $0x8] sm:$0xff]
    %v526 = vld [vmem:[%s4 + $0x10] sm:$0xff]
    %v527 = vld [vmem:[%s4 + $0x18] sm:$0xff]
    %v528 = vld [vmem:[%s4 + $0x20] sm:$0xff]
    %v529 = vld [vmem:[%s4 + $0x28] sm:$0xff]
    %v530 = vld [vmem:[%s4 + $0x30] sm:$0xff]
    %v531 = vld [vmem:[%s4 + $0x38] sm:$0xff]
    %vm532 = vcmask 523264
    %v534 = vsel %vm532, %v523, 0
    %536 = vmatprep.subr.mxu0 0.0
    %537 = vmatpush1.msra.mxu0 0.0
    %538 = vmatprep.subr.mxu0 0.0
    %539 = vmatpush1.msra.mxu0 0.0
    %540 = vmatprep.subr.mxu0 0.0
    %541 = vmatpush1.msra.mxu0 0.0
    %542 = vmatprep.subr.mxu0 0.0
    %543 = vmatpush1.msra.mxu0 0.0
    %544 = vmatprep.subr.mxu0 0.0
    %545 = vmatpush1.msra.mxu0 0.0
    %546 = vmatprep.subr.mxu0 0.0
    %547 = vmatpush1.msra.mxu0 0.0
    %548 = vmatprep.subr.mxu0 0.0
    %549 = vmatpush1.msra.mxu0 0.0
    %550 = vmatprep.subr.mxu0 0.0
    %551 = vmatpush1.msra.mxu0 0.0
    %552 = vmatprep.subr.mxu0 0.0
    %553 = vmatpush1.msra.mxu0 %v531
    %554 = vmatprep.subr.mxu0 0.0
    %555 = vmatpush1.msra.mxu0 %v530
    %556 = vmatprep.subr.mxu0 0.0
    %557 = vmatpush1.msra.mxu0 %v529
    %558 = vmatprep.subr.mxu0 0.0
    %559 = vmatpush1.msra.mxu0 %v528
    %560 = vmatprep.subr.mxu0 0.0
    %561 = vmatpush1.msra.mxu0 %v527
    %562 = vmatprep.subr.mxu0 0.0
    %563 = vmatpush1.msra.mxu0 %v526
    %564 = vmatprep.subr.mxu0 0.0
    %565 = vmatpush1.msra.mxu0 %v525
    %566 = vmatprep.subr.mxu0 0.0
    %567 = vmatpush1.msra.mxu0 %v524
    %568 = vmatprep.subr.mxu0 0.0
    %569 = vmatpush2.msra.mxu0 0.0
    %570 = vmatprep.subr.mxu0 0.0
    %571 = vmatpush2.msra.mxu0 0.0
    %572 = vmatprep.subr.mxu0 0.0
    %573 = vmatpush2.msra.mxu0 0.0
    %574 = vmatprep.subr.mxu0 0.0
    %575 = vmatpush2.msra.mxu0 0.0
    %576 = vmatprep.subr.mxu0 0.0
    %577 = vmatpush2.msra.mxu0 0.0
    %578 = vmatprep.subr.mxu0 0.0
    %579 = vmatpush2.msra.mxu0 0.0
    %580 = vmatprep.subr.mxu0 0.0
    %581 = vmatpush2.msra.mxu0 0.0
    %582 = vmatprep.subr.mxu0 0.0
    %583 = vmatpush2.msra.mxu0 0.0
    %584 = vmatprep.subr.mxu0 0.0
    %585 = vmatpush2.msra.mxu0 0.0
    %586 = vmatprep.subr.mxu0 0.0
    %587 = vmatpush2.msra.mxu0 0.0
    %588 = vmatprep.subr.mxu0 0.0
    %589 = vmatpush2.msra.mxu0 0.0
    %590 = vmatprep.subr.mxu0 0.0
    %591 = vmatpush2.msra.mxu0 0.0
    %592 = vmatprep.subr.mxu0 0.0
    %593 = vmatpush2.msra.mxu0 0.0
    %594 = vmatprep.subr.mxu0 0.0
    %595 = vmatpush2.msra.mxu0 0.0
    %596 = vmatprep.subr.mxu0 0.0
    %597 = vmatpush2.msra.mxu0 0.0
    %598 = vmatprep.subr.mxu0 0.0
    %599 = vmatpush2.msra.mxu0 0.0
    %600 = vmatprep.mubr.f32.mxu0 0.0
    %601 = vmatmul.mubr.f32.gmra.mxu0 %v534
    %v602 = vpop.f32.mrf.mxu0
    %v603 = vadd.f32 0.0, %v602
    %v604 = vpop.f32.mrf.mxu0
    %605 = vdwg.mxu0
    %v606 = vtanh.pop %v603
    %v609 = vunpack.c.l.s4 1966171168
    %v610 = vunpack.c.0.s8 %v609
    %v611 = vlaneseq
    %v612 = vshrl.u32 %v611, 7
    %v613 = vsub.s32 %v610, %v612
    %v614 = vrot.slane %v606, %v613
    %v615 = vcombine.high %v614, %v614
    %v617 = vunpack.c.l.s4 1966171168
    %v618 = vunpack.c.0.s8 %v617
    %v619 = vlaneseq
    %v620 = vshrl.u32 %v619, 7
    %v621 = vsub.s32 %v618, %v620
    %v622 = vrot.slane %v614, %v621
    %v624 = vunpack.c.l.s4 1966171168
    %v625 = vunpack.c.0.s8 %v624
    %v626 = vlaneseq
    %v627 = vshrl.u32 %v626, 7
    %v628 = vsub.s32 %v625, %v627
    %v629 = vrot.slane %v615, %v628
    %v630 = vcombine.high %v622, %v622
    %v631 = vcombine.high %v629, %v629
    %vm636 = vcmask 253952
    %637 = vst.msk [vmem:[#allocation4] sm:$0x1] %vm636, %v622
    %638 = vst.msk [vmem:[#allocation4 + $0x2] sm:$0x1] %vm636, %v629
    %639 = vst.msk [vmem:[#allocation4 + $0x4] sm:$0x1] %vm636, %v630
    %640 = vst.msk [vmem:[#allocation4 + $0x6] sm:$0x1] %vm636, %v631
    %v641 = vcombine.high %v606, %v606
    %v643 = vunpack.c.l.s4 1966171168
    %v644 = vunpack.c.0.s8 %v643
    %v645 = vlaneseq
    %v646 = vshrl.u32 %v645, 7
    %v647 = vsub.s32 %v644, %v646
    %v648 = vrot.slane %v641, %v647
    %v649 = vcombine.high %v648, %v648
    %v651 = vunpack.c.l.s4 1966171168
    %v652 = vunpack.c.0.s8 %v651
    %v653 = vlaneseq
    %v654 = vshrl.u32 %v653, 7
    %v655 = vsub.s32 %v652, %v654
    %v656 = vrot.slane %v648, %v655
    %v658 = vunpack.c.l.s4 1966171168
    %v659 = vunpack.c.0.s8 %v658
    %v660 = vlaneseq
    %v661 = vshrl.u32 %v660, 7
    %v662 = vsub.s32 %v659, %v661
    %v663 = vrot.slane %v649, %v662
    %v664 = vcombine.high %v656, %v656
    %v665 = vcombine.high %v663, %v663
    %670 = vst.msk [vmem:[#allocation4 + $0x1] sm:$0x1] %vm636, %v656
    %671 = vst.msk [vmem:[#allocation4 + $0x3] sm:$0x1] %vm636, %v663
    %672 = vst.msk [vmem:[#allocation4 + $0x5] sm:$0x1] %vm636, %v664
    %673 = vst.msk [vmem:[#allocation4 + $0x7] sm:$0x1] %vm636, %v665
    // Predicated region
    $region18: #{tpu_custom_call.1} parent=1 // pred_check
      _
    $region19: #{tpu_custom_call.1} parent=1 // pred_check_branch
      %675 = sbr.rel (0) target = $region21
    $region20: #{tpu_custom_call.1} parent=1 // pred_region
      %s677 = ssub.s32 128, 128
      %678 = vsyncadd [#allocation5], %s677
      %s679 = sshll.u32 [#allocation4], 4
      %s680 = int_to_ptr.vmem [resolvable:$true] %s679
      %685 = dma.vmem_to_hbm [thread:$0]  %s680, 128, %s5, [#allocation5], 32, 32, 2
    $region21: #{tpu_custom_call.1} parent=1 // pred_fallthru
      _
    // Predicated region
    $region22: #{tpu_custom_call.1} parent=1 // pred_check
      _
    $region23: #{tpu_custom_call.1} parent=1 // pred_check_branch
      %687 = sbr.rel (0) target = $region25
    $region24: #{tpu_custom_call.1} parent=1 // pred_region
      %s689 = ssub.s32 128, 128
      %690 = vsyncadd [#allocation7], %s689
      %s691 = sshll.u32 [#allocation6], 4
      %s692 = int_to_ptr.vmem [resolvable:$true] %s691
      %697 = dma.vmem_to_hbm [thread:$0]  %s692, 128, %s6, [#allocation7], 32, 32, 2
    $region25: #{tpu_custom_call.1} parent=1 // pred_fallthru
      _
    // Predicated region
    $region26: #{tpu_custom_call.1} parent=1 // pred_check
      _
    $region27: #{tpu_custom_call.1} parent=1 // pred_check_branch
      %699 = sbr.rel (0) target = $region29
    $region28: #{tpu_custom_call.1} parent=1 // pred_region
      %700 = dma.done [#allocation5], 128
    $region29: #{tpu_custom_call.1} parent=1 // pred_fallthru
      _
    // Predicated region
    $region30: #{tpu_custom_call.1} parent=1 // pred_check
      _
    $region31: #{tpu_custom_call.1} parent=1 // pred_check_branch
      %702 = sbr.rel (0) target = $region33
    $region32: #{tpu_custom_call.1} parent=1 // pred_region
      %703 = dma.done [#allocation7], 128
    $region33: #{tpu_custom_call.1} parent=1 // pred_fallthru
      _
    %704 = vsyncpa [#allocation5], 1
    %705 = vsyncpa [#allocation7], 1

// kernel: tpu_custom_call.1
$region0: #{tpu_custom_call.1}
  #allocation0 [shape = 'u32[]', space=smem, size = 0x4, offset = 0x4, fixed_abs, tag = 'smem constant byte address 0x4 - core index']
  #allocation1 [shape = 'u32[144,128]{1,0:T(1,128)}', space=vmem, size = 0x12000, scoped, tag = 'internal scratch']
  #allocation2 [shape = 's32[1]{0}', space=sflag, size = 0x4, scoped, tag = 'scoped memory for tpu_custom_call.1']
  #allocation3 [shape = 'u8[512]{0}', space=smem, size = 0x200, scoped, tag = 'prefetched SMEM operand 0']
  %s0 = inlined_call_operand.hbm [shape: s32[2], index: 0, kind: input, shape index: {}]
  %s1 = inlined_call_operand.hbm [shape: f32[2,4,32], index: 1, kind: input, shape index: {}]
  %s2 = inlined_call_operand.hbm [shape: f32[2,8,32], index: 2, kind: input, shape index: {}]
  %s3 = inlined_call_operand.hbm [shape: f32[32,32], index: 3, kind: input, shape index: {}]
  %s4 = inlined_call_operand.hbm [shape: f32[32,32], index: 4, kind: input, shape index: {}]
  %s5 = inlined_call_operand.hbm [shape: f32[32,32], index: 5, kind: input, shape index: {}]
  %s6 = inlined_call_operand.hbm [shape: f32[2,4,32], index: 6, kind: output, shape index: {0}]
  %s7 = inlined_call_operand.hbm [shape: f32[2,4,8], index: 7, kind: output, shape index: {1}]
  %8 = xla_tuple %s6, %s7
  %s9 = sld [smem:[#allocation0]]
  $region81: #{tpu_custom_call.1} parent=0
    _
  %s11 = ssub.s32 1, %s9
  %s12 = scalar_select 0, %s11, %s9
  %14 = dma.hbm_to_smem %s0, 16, [#allocation3], [#allocation2]
  %15 = dma.done [#allocation2], 16
  %16 = sfence
  $region1: #{tpu_custom_call.1} parent=0
    #allocation4 [shape = 'u8[4096]{0}', space=vmem, size = 0x1000, scoped, tag = 'input window, operand 1']
    #allocation5 [shape = 's32[2]{0}', space=sflag, size = 0x8, scoped, tag = 'scoped memory for tpu_custom_call.1']
    #allocation6 [shape = 's32[2]{0}', space=sflag, size = 0x8, scoped, tag = 'scoped memory for tpu_custom_call.1']
    #allocation7 [shape = 'u8[8192]{0}', space=vmem, size = 0x2000, scoped, tag = 'input window, operand 2']
    #allocation8 [shape = 's32[2]{0}', space=sflag, size = 0x8, scoped, tag = 'scoped memory for tpu_custom_call.1']
    #allocation9 [shape = 'u8[16384]{0}', space=vmem, size = 0x4000, scoped, tag = 'input window, operand 3, single buffered']
    #allocation10 [shape = 'u8[16384]{0}', space=vmem, size = 0x4000, scoped, tag = 'input window, operand 4, single buffered']
    #allocation11 [shape = 's32[1]{0}', space=sflag, size = 0x4, scoped, tag = 'scoped memory for tpu_custom_call.1']
    #allocation12 [shape = 'u8[16384]{0}', space=vmem, size = 0x4000, scoped, tag = 'input window, operand 5, single buffered']
    #allocation13 [shape = 'u8[4096]{0}', space=vmem, size = 0x1000, scoped, tag = 'output window, operand 0']
    #allocation14 [shape = 'u8[4096]{0}', space=vmem, size = 0x1000, scoped, tag = 'output window, operand 1']
    #allocation15 [shape = 's32[2]{0}', space=sflag, size = 0x8, scoped, tag = 'scoped memory for tpu_custom_call.1']
    %17 = vsyncpa [#allocation5], 0
    %s18 = scalar_lea.sflag [#allocation5], 1
    %19 = vsyncpa %s18, 0
    %20 = vsyncpa [#allocation8], 0
    %s21 = scalar_lea.sflag [#allocation8], 1
    %22 = vsyncpa %s21, 0
    %23 = vsyncpa [#allocation11], 0
    %24 = vsyncpa [#allocation6], 0
    %s25 = scalar_lea.sflag [#allocation6], 1
    %26 = vsyncpa %s25, 0
    %27 = vsyncpa [#allocation15], 0
    %s28 = scalar_lea.sflag [#allocation15], 1
    %29 = vsyncpa %s28, 0
    loop: start=0, step=1, limit=4
    $region2: #{tpu_custom_call.1} parent=1 // loop_pre_header
      _
    $region3: #{tpu_custom_call.1} parent=1 // loop_header
      %s31 = sphi 0, %s35
      %p32 = scmp.ge.s32.totalorder %s31, 4
      %s41 = sphi 0, %s43
      %s44 = sphi 0, %s41
      %s45 = sphi 0, %s44
      %s61 = sphi 0, %s45
      %s67 = sphi 0, %s69
      %s70 = sphi 0, %s67
      %s71 = sphi 0, %s70
      %s87 = sphi 0, %s71
      %s91 = sphi 0, %s91
      %s93 = sphi 0, %s91
      %s94 = sphi 0, %s93
      %s108 = sphi 0, %s94
      %s112 = sphi 0, %s112
      %s114 = sphi 0, %s112
      %s115 = sphi 0, %s114
      %s129 = sphi 0, %s115
      %s133 = sphi 0, %s133
      %s135 = sphi 0, %s133
      %s136 = sphi 0, %s135
      %s150 = sphi 0, %s136
      %s156 = sphi 0, %s158
      %s159 = sphi 0, %s156
      %s160 = sphi 0, %s159
      %s176 = sphi 0, %s160
      %s182 = sphi 0, %s184
      %s185 = sphi 0, %s182
      %s186 = sphi 0, %s185
      %s202 = sphi 0, %s186
    $region4: #{tpu_custom_call.1} parent=1 // loop_header_branch
      %34 = sbr.rel (%p32) target = $region8
    $region5: #{tpu_custom_call.1} parent=1 // loop_body
      %s36 = ssub.s32 %s31, 1
      %s37 = ssub.s32 %s31, 2
      %s38 = sadd.s32 %s31, 1
      %s39 = ssub.s32 %s31, %s38
      %p40 = scmp.eq.s32.totalorder %s39, 0
      %s42 = sadd.s32 %s41, 1
      %s43 = scalar_select %p40, %s41, %s42
      %p46 = pneg %p40
      %p47 = scmp.eq.s32.totalorder %s31, 1
      %p48 = por %p46, %p47
      %p49 = scmp.ne.s32.totalorder %s41, %s44
      %p50 = scmp.eq.s32.totalorder %s31, 0
      %p51 = por %p49, %p50
      %p52 = scmp.ne.s32.totalorder %s41, %s44
      %p53 = scmp.eq.s32.totalorder %s36, 1
      %p54 = por %p52, %p53
      %p55 = scmp.ne.s32.totalorder %s44, %s45
      %p56 = scmp.eq.s32.totalorder %s36, 0
      %p57 = por %p55, %p56
      %p58 = scmp.ne.s32.totalorder %s44, %s45
      %p59 = scmp.eq.s32.totalorder %s37, 1
      %p60 = por %p58, %p59
      %p62 = scmp.ne.s32.totalorder %s45, %s61
      %p63 = scmp.eq.s32.totalorder %s37, 0
      %p64 = por %p62, %p63
      %s65 = ssub.s32 %s31, %s38
      %p66 = scmp.eq.s32.totalorder %s65, 0
      %s68 = sadd.s32 %s67, 1
      %s69 = scalar_select %p66, %s67, %s68
      %p72 = pneg %p66
      %p73 = scmp.eq.s32.totalorder %s31, 1
      %p74 = por %p72, %p73
      %p75 = scmp.ne.s32.totalorder %s67, %s70
      %p76 = scmp.eq.s32.totalorder %s31, 0
      %p77 = por %p75, %p76
      %p78 = scmp.ne.s32.totalorder %s67, %s70
      %p79 = scmp.eq.s32.totalorder %s36, 1
      %p80 = por %p78, %p79
      %p81 = scmp.ne.s32.totalorder %s70, %s71
      %p82 = scmp.eq.s32.totalorder %s36, 0
      %p83 = por %p81, %p82
      %p84 = scmp.ne.s32.totalorder %s70, %s71
      %p85 = scmp.eq.s32.totalorder %s37, 1
      %p86 = por %p84, %p85
      %p88 = scmp.ne.s32.totalorder %s71, %s87
      %p89 = scmp.eq.s32.totalorder %s37, 0
      %p90 = por %p88, %p89
      %s92 = sadd.s32 %s91, 1
      %p95 = scmp.eq.s32.totalorder %s31, 1
      %p96 = scmp.ne.s32.totalorder %s91, %s93
      %p97 = scmp.eq.s32.totalorder %s31, 0
      %p98 = por %p96, %p97
      %p99 = scmp.ne.s32.totalorder %s91, %s93
      %p100 = scmp.eq.s32.totalorder %s36, 1
      %p101 = por %p99, %p100
      %p102 = scmp.ne.s32.totalorder %s93, %s94
      %p103 = scmp.eq.s32.totalorder %s36, 0
      %p104 = por %p102, %p103
      %p105 = scmp.ne.s32.totalorder %s93, %s94
      %p106 = scmp.eq.s32.totalorder %s37, 1
      %p107 = por %p105, %p106
      %p109 = scmp.ne.s32.totalorder %s94, %s108
      %p110 = scmp.eq.s32.totalorder %s37, 0
      %p111 = por %p109, %p110
      %s113 = sadd.s32 %s112, 1
      %p116 = scmp.eq.s32.totalorder %s31, 1
      %p117 = scmp.ne.s32.totalorder %s112, %s114
      %p118 = scmp.eq.s32.totalorder %s31, 0
      %p119 = por %p117, %p118
      %p120 = scmp.ne.s32.totalorder %s112, %s114
      %p121 = scmp.eq.s32.totalorder %s36, 1
      %p122 = por %p120, %p121
      %p123 = scmp.ne.s32.totalorder %s114, %s115
      %p124 = scmp.eq.s32.totalorder %s36, 0
      %p125 = por %p123, %p124
      %p126 = scmp.ne.s32.totalorder %s114, %s115
      %p127 = scmp.eq.s32.totalorder %s37, 1
      %p128 = por %p126, %p127
      %p130 = scmp.ne.s32.totalorder %s115, %s129
      %p131 = scmp.eq.s32.totalorder %s37, 0
      %p132 = por %p130, %p131
      %s134 = sadd.s32 %s133, 1
      %p137 = scmp.eq.s32.totalorder %s31, 1
      %p138 = scmp.ne.s32.totalorder %s133, %s135
      %p139 = scmp.eq.s32.totalorder %s31, 0
      %p140 = por %p138, %p139
      %p141 = scmp.ne.s32.totalorder %s133, %s135
      %p142 = scmp.eq.s32.totalorder %s36, 1
      %p143 = por %p141, %p142
      %p144 = scmp.ne.s32.totalorder %s135, %s136
      %p145 = scmp.eq.s32.totalorder %s36, 0
      %p146 = por %p144, %p145
      %p147 = scmp.ne.s32.totalorder %s135, %s136
      %p148 = scmp.eq.s32.totalorder %s37, 1
      %p149 = por %p147, %p148
      %p151 = scmp.ne.s32.totalorder %s136, %s150
      %p152 = scmp.eq.s32.totalorder %s37, 0
      %p153 = por %p151, %p152
      %s154 = ssub.s32 %s31, %s38
      %p155 = scmp.eq.s32.totalorder %s154, 0
      %s157 = sadd.s32 %s156, 1
      %s158 = scalar_select %p155, %s156, %s157
      %p161 = pneg %p155
      %p162 = scmp.eq.s32.totalorder %s31, 1
      %p163 = por %p161, %p162
      %p164 = scmp.ne.s32.totalorder %s156, %s159
      %p165 = scmp.eq.s32.totalorder %s31, 0
      %p166 = por %p164, %p165
      %p167 = scmp.ne.s32.totalorder %s156, %s159
      %p168 = scmp.eq.s32.totalorder %s36, 1
      %p169 = por %p167, %p168
      %p170 = scmp.ne.s32.totalorder %s159, %s160
      %p171 = scmp.eq.s32.totalorder %s36, 0
      %p172 = por %p170, %p171
      %p173 = scmp.ne.s32.totalorder %s159, %s160
      %p174 = scmp.eq.s32.totalorder %s37, 1
      %p175 = por %p173, %p174
      %p177 = scmp.ne.s32.totalorder %s160, %s176
      %p178 = scmp.eq.s32.totalorder %s37, 0
      %p179 = por %p177, %p178
      %s180 = ssub.s32 %s31, %s38
      %p181 = scmp.eq.s32.totalorder %s180, 0
      %s183 = sadd.s32 %s182, 1
      %s184 = scalar_select %p181, %s182, %s183
      %p187 = pneg %p181
      %p188 = scmp.eq.s32.totalorder %s31, 1
      %p189 = por %p187, %p188
      %p190 = scmp.ne.s32.totalorder %s182, %s185
      %p191 = scmp.eq.s32.totalorder %s31, 0
      %p192 = por %p190, %p191
      %p193 = scmp.ne.s32.totalorder %s182, %s185
      %p194 = scmp.eq.s32.totalorder %s36, 1
      %p195 = por %p193, %p194
      %p196 = scmp.ne.s32.totalorder %s185, %s186
      %p197 = scmp.eq.s32.totalorder %s36, 0
      %p198 = por %p196, %p197
      %p199 = scmp.ne.s32.totalorder %s185, %s186
      %p200 = scmp.eq.s32.totalorder %s37, 1
      %p201 = por %p199, %p200
      %p203 = scmp.ne.s32.totalorder %s186, %s202
      %p204 = scmp.eq.s32.totalorder %s37, 0
      %p205 = por %p203, %p204
      %p206 = scmp.le.s32.totalorder 1, %s31
      %p207 = scmp.lt.s32.totalorder %s31, 3
      %p208 = pnand %p206, %p207
      %p209 = pneg %p208
      // Predicated region
      $region9: #{tpu_custom_call.1} parent=5 // pred_check
        _
      $region10: #{tpu_custom_call.1} parent=5 // pred_check_branch
        %211 = sbr.rel (%p208) target = $region12
      $region11: #{tpu_custom_call.1} parent=5 // pred_region
        %s212 = ssub.s32 %s31, 1
        // Predicated region
        $region13: #{tpu_custom_call.1} parent=11 // pred_check
          %p213 = pneg %p104
        $region14: #{tpu_custom_call.1} parent=11 // pred_check_branch
          %215 = sbr.rel (%p213) target = $region16
        $region15: #{tpu_custom_call.1} parent=11 // pred_region
          %s217 = ssub.s32 512, 512
          %218 = vsyncadd [#allocation8], %s217
          %s219 = sshll.u32 [#allocation9], 4
          %s220 = int_to_ptr.vmem [resolvable:$true] %s219
          %225 = dma.hbm_to_vmem [thread:$0]  %s3, 512, %s220, [#allocation8], 128, 128, 8
        $region16: #{tpu_custom_call.1} parent=11 // pred_fallthru
          _
        // Predicated region
        $region17: #{tpu_custom_call.1} parent=11 // pred_check
          %p226 = pneg %p125
        $region18: #{tpu_custom_call.1} parent=11 // pred_check_branch
          %228 = sbr.rel (%p226) target = $region20
        $region19: #{tpu_custom_call.1} parent=11 // pred_region
          %s230 = ssub.s32 512, 512
          %231 = vsyncadd [#allocation11], %s230
          %s232 = sshll.u32 [#allocation10], 4
          %s233 = int_to_ptr.vmem [resolvable:$true] %s232
          %238 = dma.hbm_to_vmem [thread:$0]  %s4, 512, %s233, [#allocation11], 128, 128, 8
        $region20: #{tpu_custom_call.1} parent=11 // pred_fallthru
          _
        // Predicated region
        $region21: #{tpu_custom_call.1} parent=11 // pred_check
          %p239 = pneg %p146
        $region22: #{tpu_custom_call.1} parent=11 // pred_check_branch
          %241 = sbr.rel (%p239) target = $region24
        $region23: #{tpu_custom_call.1} parent=11 // pred_region
          %s243 = ssub.s32 512, 512
          %244 = vsyncadd [#allocation11], %s243
          %s245 = sshll.u32 [#allocation12], 4
          %s246 = int_to_ptr.vmem [resolvable:$true] %s245
          %251 = dma.hbm_to_vmem [thread:$0]  %s5, 512, %s246, [#allocation11], 128, 128, 8
        $region24: #{tpu_custom_call.1} parent=11 // pred_fallthru
          _
      $region12: #{tpu_custom_call.1} parent=5 // pred_fallthru
        _
      %p252 = scmp.lt.s32.totalorder %s31, 2
      // Predicated region
      $region25: #{tpu_custom_call.1} parent=5 // pred_check
        %p253 = pneg %p252
      $region26: #{tpu_custom_call.1} parent=5 // pred_check_branch
        %255 = sbr.rel (%p253) target = $region28
      $region27: #{tpu_custom_call.1} parent=5 // pred_region
        // Predicated region
        $region29: #{tpu_custom_call.1} parent=27 // pred_check
          %p256 = pneg %p51
        $region30: #{tpu_custom_call.1} parent=27 // pred_check_branch
          %258 = sbr.rel (%p256) target = $region32
        $region31: #{tpu_custom_call.1} parent=27 // pred_region
          %s259 = sand.u32 %s41, 1
          %s260 = scalar_lea.sflag [#allocation5], %s259
          %s261 = sand.u32 %s41, 1
          %s262 = smul.addr %s261, 4
          %s263 = scalar_lea.vmem [#allocation4], %s262
          %s265 = ssub.s32 64, 64
          %266 = vsyncadd %s260, %s265
          %s267 = smul.addr %s31, 64
          %s268 = scalar_lea.hbm %s1, %s267
          %s270 = sshll.u32 %s263, 4
          %s271 = int_to_ptr.vmem [resolvable:$true] %s270
          %273 = dma.hbm_to_vmem [thread:$0]  %s268, 64, %s271, %s260
        $region32: #{tpu_custom_call.1} parent=27 // pred_fallthru
          _
        // Predicated region
        $region33: #{tpu_custom_call.1} parent=27 // pred_check
          %p274 = pneg %p77
        $region34: #{tpu_custom_call.1} parent=27 // pred_check_branch
          %276 = sbr.rel (%p274) target = $region36
        $region35: #{tpu_custom_call.1} parent=27 // pred_region
          %s277 = sand.u32 %s31, 1
          %s278 = scalar_lea.sflag [#allocation8], %s277
          %s279 = sand.u32 %s67, 1
          %s280 = smul.addr %s279, 8
          %s281 = scalar_lea.vmem [#allocation7], %s280
          %s283 = ssub.s32 128, 128
          %284 = vsyncadd %s278, %s283
          %s285 = smul.addr %s31, 128
          %s286 = scalar_lea.hbm %s2, %s285
          %s288 = sshll.u32 %s281, 4
          %s289 = int_to_ptr.vmem [resolvable:$true] %s288
          %291 = dma.hbm_to_vmem [thread:$0]  %s286, 128, %s289, %s278
        $region36: #{tpu_custom_call.1} parent=27 // pred_fallthru
          _
      $region28: #{tpu_custom_call.1} parent=5 // pred_fallthru
        _
      %p292 = scmp.le.s32.totalorder 1, %s31
      %p293 = scmp.lt.s32.totalorder %s31, 3
      %p294 = pnand %p292, %p293
      %p295 = pneg %p294
      // Predicated region
      $region37: #{tpu_custom_call.1} parent=5 // pred_check
        _
      $region38: #{tpu_custom_call.1} parent=5 // pred_check_branch
        %297 = sbr.rel (%p294) target = $region40
      $region39: #{tpu_custom_call.1} parent=5 // pred_region
        %s298 = ssub.s32 %s31, 1
        %s299 = sand.u32 %s44, 1
        %s300 = scalar_lea.sflag [#allocation5], %s299
        %s301 = sand.u32 %s44, 1
        %s302 = smul.addr %s301, 4
        %s303 = scalar_lea.vmem [#allocation4], %s302
        // Predicated region
        $region41: #{tpu_custom_call.1} parent=39 // pred_check
          %p304 = pneg %p57
        $region42: #{tpu_custom_call.1} parent=39 // pred_check_branch
          %306 = sbr.rel (%p304) target = $region44
        $region43: #{tpu_custom_call.1} parent=39 // pred_region
          %307 = dma.done %s300, 64
        $region44: #{tpu_custom_call.1} parent=39 // pred_fallthru
          _
        %s308 = sand.u32 %s36, 1
        %s309 = scalar_lea.sflag [#allocation8], %s308
        %s310 = sand.u32 %s70, 1
        %s311 = smul.addr %s310, 8
        %s312 = scalar_lea.vmem [#allocation7], %s311
        // Predicated region
        $region45: #{tpu_custom_call.1} parent=39 // pred_check
          %p313 = pneg %p83
        $region46: #{tpu_custom_call.1} parent=39 // pred_check_branch
          %315 = sbr.rel (%p313) target = $region48
        $region47: #{tpu_custom_call.1} parent=39 // pred_region
          %316 = dma.done %s309, 128
        $region48: #{tpu_custom_call.1} parent=39 // pred_fallthru
          _
        // Predicated region
        $region49: #{tpu_custom_call.1} parent=39 // pred_check
          %p317 = pneg %p104
        $region50: #{tpu_custom_call.1} parent=39 // pred_check_branch
          %319 = sbr.rel (%p317) target = $region52
        $region51: #{tpu_custom_call.1} parent=39 // pred_region
          %320 = dma.done [#allocation8], 512
        $region52: #{tpu_custom_call.1} parent=39 // pred_fallthru
          _
        // Predicated region
        $region53: #{tpu_custom_call.1} parent=39 // pred_check
          %p321 = pneg %p125
        $region54: #{tpu_custom_call.1} parent=39 // pred_check_branch
          %323 = sbr.rel (%p321) target = $region56
        $region55: #{tpu_custom_call.1} parent=39 // pred_region
          %324 = dma.done [#allocation11], 512
        $region56: #{tpu_custom_call.1} parent=39 // pred_fallthru
          _
        // Predicated region
        $region57: #{tpu_custom_call.1} parent=39 // pred_check
          %p325 = pneg %p146
        $region58: #{tpu_custom_call.1} parent=39 // pred_check_branch
          %327 = sbr.rel (%p325) target = $region60
        $region59: #{tpu_custom_call.1} parent=39 // pred_region
          %328 = dma.done [#allocation11], 512
        $region60: #{tpu_custom_call.1} parent=39 // pred_fallthru
          _
        %s329 = sand.u32 %s44, 1
        %s330 = scalar_lea.sflag [#allocation5], %s329
        %s331 = sand.u32 %s44, 1
        %s332 = smul.addr %s331, 4
        %s333 = scalar_lea.vmem [#allocation4], %s332
        %p334 = pneg %p57
        %p335 = pneg %p54
        %s336 = sand.u32 %s36, 1
        %s337 = scalar_lea.sflag [#allocation8], %s336
        %s338 = sand.u32 %s70, 1
        %s339 = smul.addr %s338, 8
        %s340 = scalar_lea.vmem [#allocation7], %s339
        %p341 = pneg %p83
        %p342 = pneg %p80
        %p343 = pneg %p104
        %p344 = pneg %p101
        %p345 = pneg %p125
        %p346 = pneg %p122
        %p347 = pneg %p146
        %p348 = pneg %p143
        %p349 = pneg %p172
        %p350 = pneg %p169
        %s351 = sand.u32 %s159, 1
        %s352 = scalar_lea.sflag [#allocation6], %s351
        %s353 = sand.u32 %s159, 1
        %s354 = smul.addr %s353, 4
        %s355 = scalar_lea.vmem [#allocation13], %s354
        %p356 = pneg %p198
        %p357 = pneg %p195
        %s358 = sand.u32 %s185, 1
        %s359 = scalar_lea.sflag [#allocation15], %s358
        %s360 = sand.u32 %s185, 1
        %s361 = smul.addr %s360, 4
        %s362 = scalar_lea.vmem [#allocation14], %s361
        %v363 = vld [vmem:[%s303] sm:$0xf]
        %v364 = vld [vmem:[%s312] sm:$0xff]
        %v365 = vld [vmem:[#allocation9] sm:$0xff]
        %v366 = vld [vmem:[#allocation9 + $0x8] sm:$0xff]
        %v367 = vld [vmem:[#allocation9 + $0x10] sm:$0xff]
        %v368 = vld [vmem:[#allocation9 + $0x18] sm:$0xff]
        %vm369 = vcmask 261120
        %v371 = vsel %vm369, %v363, 0
        %373 = vmatprep.subr.mxu0 0.0
        %374 = vmatpush1.msra.mxu0 0.0
        %375 = vmatprep.subr.mxu0 0.0
        %376 = vmatpush1.msra.mxu0 0.0
        %377 = vmatprep.subr.mxu0 0.0
        %378 = vmatpush1.msra.mxu0 0.0
        %379 = vmatprep.subr.mxu0 0.0
        %380 = vmatpush1.msra.mxu0 0.0
        %381 = vmatprep.subr.mxu0 0.0
        %382 = vmatpush1.msra.mxu0 0.0
        %383 = vmatprep.subr.mxu0 0.0
        %384 = vmatpush1.msra.mxu0 0.0
        %385 = vmatprep.subr.mxu0 0.0
        %386 = vmatpush1.msra.mxu0 0.0
        %387 = vmatprep.subr.mxu0 0.0
        %388 = vmatpush1.msra.mxu0 0.0
        %389 = vmatprep.subr.mxu0 0.0
        %390 = vmatpush1.msra.mxu0 0.0
        %391 = vmatprep.subr.mxu0 0.0
        %392 = vmatpush1.msra.mxu0 0.0
        %393 = vmatprep.subr.mxu0 0.0
        %394 = vmatpush1.msra.mxu0 0.0
        %395 = vmatprep.subr.mxu0 0.0
        %396 = vmatpush1.msra.mxu0 0.0
        %397 = vmatprep.subr.mxu0 0.0
        %398 = vmatpush1.msra.mxu0 %v368
        %399 = vmatprep.subr.mxu0 0.0
        %400 = vmatpush1.msra.mxu0 %v367
        %401 = vmatprep.subr.mxu0 0.0
        %402 = vmatpush1.msra.mxu0 %v366
        %403 = vmatprep.subr.mxu0 0.0
        %404 = vmatpush1.msra.mxu0 %v365
        %405 = vmatprep.subr.mxu0 0.0
        %406 = vmatpush2.msra.mxu0 0.0
        %407 = vmatprep.subr.mxu0 0.0
        %408 = vmatpush2.msra.mxu0 0.0
        %409 = vmatprep.subr.mxu0 0.0
        %410 = vmatpush2.msra.mxu0 0.0
        %411 = vmatprep.subr.mxu0 0.0
        %412 = vmatpush2.msra.mxu0 0.0
        %413 = vmatprep.subr.mxu0 0.0
        %414 = vmatpush2.msra.mxu0 0.0
        %415 = vmatprep.subr.mxu0 0.0
        %416 = vmatpush2.msra.mxu0 0.0
        %417 = vmatprep.subr.mxu0 0.0
        %418 = vmatpush2.msra.mxu0 0.0
        %419 = vmatprep.subr.mxu0 0.0
        %420 = vmatpush2.msra.mxu0 0.0
        %421 = vmatprep.subr.mxu0 0.0
        %422 = vmatpush2.msra.mxu0 0.0
        %423 = vmatprep.subr.mxu0 0.0
        %424 = vmatpush2.msra.mxu0 0.0
        %425 = vmatprep.subr.mxu0 0.0
        %426 = vmatpush2.msra.mxu0 0.0
        %427 = vmatprep.subr.mxu0 0.0
        %428 = vmatpush2.msra.mxu0 0.0
        %429 = vmatprep.subr.mxu0 0.0
        %430 = vmatpush2.msra.mxu0 0.0
        %431 = vmatprep.subr.mxu0 0.0
        %432 = vmatpush2.msra.mxu0 0.0
        %433 = vmatprep.subr.mxu0 0.0
        %434 = vmatpush2.msra.mxu0 0.0
        %435 = vmatprep.subr.mxu0 0.0
        %436 = vmatpush2.msra.mxu0 0.0
        %437 = vmatprep.mubr.f32.mxu0 0.0
        %438 = vmatmul.mubr.f32.gmra.mxu0 %v371
        %v439 = vpop.f32.mrf.mxu0
        %v440 = vadd.f32 0.0, %v439
        %v441 = vpop.f32.mrf.mxu0
        %442 = vdwg.mxu0
        %v444 = vsel %vm369, %v440, 0
        %v447 = vsel %vm369, %v364, 0
        %449 = vmatprep.subr.mxu0 0.0
        %450 = vmatpush1.xpose.msra.mxu0 0.0
        %451 = vmatprep.subr.mxu0 0.0
        %452 = vmatpush1.xpose.msra.mxu0 0.0
        %453 = vmatprep.subr.mxu0 0.0
        %454 = vmatpush1.xpose.msra.mxu0 0.0
        %455 = vmatprep.subr.mxu0 0.0
        %456 = vmatpush1.xpose.msra.mxu0 0.0
        %457 = vmatprep.subr.mxu0 0.0
        %458 = vmatpush1.xpose.msra.mxu0 0.0
        %459 = vmatprep.subr.mxu0 0.0
        %460 = vmatpush1.xpose.msra.mxu0 0.0
        %461 = vmatprep.subr.mxu0 0.0
        %462 = vmatpush1.xpose.msra.mxu0 0.0
        %463 = vmatprep.subr.mxu0 0.0
        %464 = vmatpush1.xpose.msra.mxu0 0.0
        %465 = vmatprep.subr.mxu0 0.0
        %466 = vmatpush1.xpose.msra.mxu0 0.0
        %467 = vmatprep.subr.mxu0 0.0
        %468 = vmatpush1.xpose.msra.mxu0 0.0
        %469 = vmatprep.subr.mxu0 0.0
        %470 = vmatpush1.xpose.msra.mxu0 0.0
        %471 = vmatprep.subr.mxu0 0.0
        %472 = vmatpush1.xpose.msra.mxu0 0.0
        %473 = vmatprep.subr.mxu0 0.0
        %474 = vmatpush1.xpose.msra.mxu0 0.0
        %475 = vmatprep.subr.mxu0 0.0
        %476 = vmatpush1.xpose.msra.mxu0 0.0
        %477 = vmatprep.subr.mxu0 0.0
        %478 = vmatpush1.xpose.msra.mxu0 0.0
        %479 = vmatprep.subr.mxu0 0.0
        %480 = vmatpush1.xpose.msra.mxu0 %v447
        %481 = vmatprep.subr.mxu0 0.0
        %482 = vmatpush2.xpose.msra.mxu0 0.0
        %483 = vmatprep.subr.mxu0 0.0
        %484 = vmatpush2.xpose.msra.mxu0 0.0
        %485 = vmatprep.subr.mxu0 0.0
        %486 = vmatpush2.xpose.msra.mxu0 0.0
        %487 = vmatprep.subr.mxu0 0.0
        %488 = vmatpush2.xpose.msra.mxu0 0.0
        %489 = vmatprep.subr.mxu0 0.0
        %490 = vmatpush2.xpose.msra.mxu0 0.0
        %491 = vmatprep.subr.mxu0 0.0
        %492 = vmatpush2.xpose.msra.mxu0 0.0
        %493 = vmatprep.subr.mxu0 0.0
        %494 = vmatpush2.xpose.msra.mxu0 0.0
        %495 = vmatprep.subr.mxu0 0.0
        %496 = vmatpush2.xpose.msra.mxu0 0.0
        %497 = vmatprep.subr.mxu0 0.0
        %498 = vmatpush2.xpose.msra.mxu0 0.0
        %499 = vmatprep.subr.mxu0 0.0
        %500 = vmatpush2.xpose.msra.mxu0 0.0
        %501 = vmatprep.subr.mxu0 0.0
        %502 = vmatpush2.xpose.msra.mxu0 0.0
        %503 = vmatprep.subr.mxu0 0.0
        %504 = vmatpush2.xpose.msra.mxu0 0.0
        %505 = vmatprep.subr.mxu0 0.0
        %506 = vmatpush2.xpose.msra.mxu0 0.0
        %507 = vmatprep.subr.mxu0 0.0
        %508 = vmatpush2.xpose.msra.mxu0 0.0
        %509 = vmatprep.subr.mxu0 0.0
        %510 = vmatpush2.xpose.msra.mxu0 0.0
        %511 = vmatprep.subr.mxu0 0.0
        %512 = vmatpush2.xpose.msra.mxu0 0.0
        %513 = vmatprep.mubr.f32.mxu0 0.0
        %514 = vmatmul.mubr.f32.gmra.mxu0 %v444
        %v515 = vpop.f32.mrf.mxu0
        %v516 = vadd.f32 0.0, %v515
        %v517 = vpop.f32.mrf.mxu0
        %518 = vdwg.mxu0
        %v519 = vlaneseq
        %v520 = vand.u32 %v519, 127
        %s521 = sld [smem:[#allocation3 + %s36]]
        %v522 = vstv %s521
        %vm523 = vcmp.lt.s32.totalorder %v520, %v522
        %v524 = vsel %vm523, %v516, -1e+30
        %vm525 = vcmask 60416
        %v526 = vsel %vm525, %v524, -inf
        %527 = vmax.xlane.f32.xlu0 %v526
        %v528 = vpop.xlane.xlu0 %527
        %v529 = vsub.f32 %v524, %v528
        %v530 = vmul.f32 %v529, 1.442695
        %v531 = vpow.pop %v530
        %v532 = vsel %vm525, %v531, 0.0
        %533 = vadd.xlane.f32.xlu0 %v532
        %v534 = vpop.xlane.xlu0 %533
        %v535 = vrcp.pop %v534
        %v536 = vmul.f32 %v531, %v535
        %537 = vst.msk [vmem:[%s362] sm:$0xf] %vm525, %v536
        %vm538 = vcmask 64512
        %v540 = vsel %vm538, %v536, 0
        %542 = vmatprep.subr.mxu0 0.0
        %543 = vmatpush1.msra.mxu0 0.0
        %544 = vmatprep.subr.mxu0 0.0
        %545 = vmatpush1.msra.mxu0 0.0
        %546 = vmatprep.subr.mxu0 0.0
        %547 = vmatpush1.msra.mxu0 0.0
        %548 = vmatprep.subr.mxu0 0.0
        %549 = vmatpush1.msra.mxu0 0.0
        %550 = vmatprep.subr.mxu0 0.0
        %551 = vmatpush1.msra.mxu0 0.0
        %552 = vmatprep.subr.mxu0 0.0
        %553 = vmatpush1.msra.mxu0 0.0
        %554 = vmatprep.subr.mxu0 0.0
        %555 = vmatpush1.msra.mxu0 0.0
        %556 = vmatprep.subr.mxu0 0.0
        %557 = vmatpush1.msra.mxu0 0.0
        %558 = vmatprep.subr.mxu0 0.0
        %559 = vmatpush1.msra.mxu0 0.0
        %560 = vmatprep.subr.mxu0 0.0
        %561 = vmatpush1.msra.mxu0 0.0
        %562 = vmatprep.subr.mxu0 0.0
        %563 = vmatpush1.msra.mxu0 0.0
        %564 = vmatprep.subr.mxu0 0.0
        %565 = vmatpush1.msra.mxu0 0.0
        %566 = vmatprep.subr.mxu0 0.0
        %567 = vmatpush1.msra.mxu0 0.0
        %568 = vmatprep.subr.mxu0 0.0
        %569 = vmatpush1.msra.mxu0 0.0
        %570 = vmatprep.subr.mxu0 0.0
        %571 = vmatpush1.msra.mxu0 0.0
        %572 = vmatprep.subr.mxu0 0.0
        %573 = vmatpush1.msra.mxu0 %v364
        %574 = vmatprep.subr.mxu0 0.0
        %575 = vmatpush2.msra.mxu0 0.0
        %576 = vmatprep.subr.mxu0 0.0
        %577 = vmatpush2.msra.mxu0 0.0
        %578 = vmatprep.subr.mxu0 0.0
        %579 = vmatpush2.msra.mxu0 0.0
        %580 = vmatprep.subr.mxu0 0.0
        %581 = vmatpush2.msra.mxu0 0.0
        %582 = vmatprep.subr.mxu0 0.0
        %583 = vmatpush2.msra.mxu0 0.0
        %584 = vmatprep.subr.mxu0 0.0
        %585 = vmatpush2.msra.mxu0 0.0
        %586 = vmatprep.subr.mxu0 0.0
        %587 = vmatpush2.msra.mxu0 0.0
        %588 = vmatprep.subr.mxu0 0.0
        %589 = vmatpush2.msra.mxu0 0.0
        %590 = vmatprep.subr.mxu0 0.0
        %591 = vmatpush2.msra.mxu0 0.0
        %592 = vmatprep.subr.mxu0 0.0
        %593 = vmatpush2.msra.mxu0 0.0
        %594 = vmatprep.subr.mxu0 0.0
        %595 = vmatpush2.msra.mxu0 0.0
        %596 = vmatprep.subr.mxu0 0.0
        %597 = vmatpush2.msra.mxu0 0.0
        %598 = vmatprep.subr.mxu0 0.0
        %599 = vmatpush2.msra.mxu0 0.0
        %600 = vmatprep.subr.mxu0 0.0
        %601 = vmatpush2.msra.mxu0 0.0
        %602 = vmatprep.subr.mxu0 0.0
        %603 = vmatpush2.msra.mxu0 0.0
        %604 = vmatprep.subr.mxu0 0.0
        %605 = vmatpush2.msra.mxu0 0.0
        %606 = vmatprep.mubr.f32.mxu0 0.0
        %607 = vmatmul.mubr.f32.gmra.mxu0 %v540
        %v608 = vpop.f32.mrf.mxu0
        %v609 = vadd.f32 0.0, %v608
        %v610 = vpop.f32.mrf.mxu0
        %611 = vdwg.mxu0
        %v612 = vld [vmem:[#allocation10] sm:$0xff]
        %v613 = vld [vmem:[#allocation10 + $0x8] sm:$0xff]
        %v614 = vld [vmem:[#allocation10 + $0x10] sm:$0xff]
        %v615 = vld [vmem:[#allocation10 + $0x18] sm:$0xff]
        %v616 = vld [vmem:[#allocation12] sm:$0xff]
        %v617 = vld [vmem:[#allocation12 + $0x8] sm:$0xff]
        %v618 = vld [vmem:[#allocation12 + $0x10] sm:$0xff]
        %v619 = vld [vmem:[#allocation12 + $0x18] sm:$0xff]
        %620 = vmatprep.subr.mxu0 0.0
        %621 = vmatpush1.msra.mxu0 0.0
        %622 = vmatprep.subr.mxu0 0.0
        %623 = vmatpush1.msra.mxu0 0.0
        %624 = vmatprep.subr.mxu0 0.0
        %625 = vmatpush1.msra.mxu0 0.0
        %626 = vmatprep.subr.mxu0 0.0
        %627 = vmatpush1.msra.mxu0 0.0
        %628 = vmatprep.subr.mxu0 0.0
        %629 = vmatpush1.msra.mxu0 0.0
        %630 = vmatprep.subr.mxu0 0.0
        %631 = vmatpush1.msra.mxu0 0.0
        %632 = vmatprep.subr.mxu0 0.0
        %633 = vmatpush1.msra.mxu0 0.0
        %634 = vmatprep.subr.mxu0 0.0
        %635 = vmatpush1.msra.mxu0 0.0
        %636 = vmatprep.subr.mxu0 0.0
        %637 = vmatpush1.msra.mxu0 0.0
        %638 = vmatprep.subr.mxu0 0.0
        %639 = vmatpush1.msra.mxu0 0.0
        %640 = vmatprep.subr.mxu0 0.0
        %641 = vmatpush1.msra.mxu0 0.0
        %642 = vmatprep.subr.mxu0 0.0
        %643 = vmatpush1.msra.mxu0 0.0
        %644 = vmatprep.subr.mxu0 0.0
        %645 = vmatpush1.msra.mxu0 %v619
        %646 = vmatprep.subr.mxu0 0.0
        %647 = vmatpush1.msra.mxu0 %v618
        %648 = vmatprep.subr.mxu0 0.0
        %649 = vmatpush1.msra.mxu0 %v617
        %650 = vmatprep.subr.mxu0 0.0
        %651 = vmatpush1.msra.mxu0 %v616
        %652 = vmatprep.subr.mxu0 0.0
        %653 = vmatpush2.msra.mxu0 0.0
        %654 = vmatprep.subr.mxu0 0.0
        %655 = vmatpush2.msra.mxu0 0.0
        %656 = vmatprep.subr.mxu0 0.0
        %657 = vmatpush2.msra.mxu0 0.0
        %658 = vmatprep.subr.mxu0 0.0
        %659 = vmatpush2.msra.mxu0 0.0
        %660 = vmatprep.subr.mxu0 0.0
        %661 = vmatpush2.msra.mxu0 0.0
        %662 = vmatprep.subr.mxu0 0.0
        %663 = vmatpush2.msra.mxu0 0.0
        %664 = vmatprep.subr.mxu0 0.0
        %665 = vmatpush2.msra.mxu0 0.0
        %666 = vmatprep.subr.mxu0 0.0
        %667 = vmatpush2.msra.mxu0 0.0
        %668 = vmatprep.subr.mxu0 0.0
        %669 = vmatpush2.msra.mxu0 0.0
        %670 = vmatprep.subr.mxu0 0.0
        %671 = vmatpush2.msra.mxu0 0.0
        %672 = vmatprep.subr.mxu0 0.0
        %673 = vmatpush2.msra.mxu0 0.0
        %674 = vmatprep.subr.mxu0 0.0
        %675 = vmatpush2.msra.mxu0 0.0
        %676 = vmatprep.subr.mxu0 0.0
        %677 = vmatpush2.msra.mxu0 0.0
        %678 = vmatprep.subr.mxu0 0.0
        %679 = vmatpush2.msra.mxu0 0.0
        %680 = vmatprep.subr.mxu0 0.0
        %681 = vmatpush2.msra.mxu0 0.0
        %682 = vmatprep.subr.mxu0 0.0
        %683 = vmatpush2.msra.mxu0 0.0
        %684 = vmatprep.mubr.f32.mxu0 0.0
        %685 = vmatmul.mubr.f32.gmra.mxu0 %v371
        %v686 = vpop.f32.mrf.mxu0
        %v687 = vadd.f32 0.0, %v686
        %v688 = vpop.f32.mrf.mxu0
        %689 = vdwg.mxu0
        %v691 = vsel %vm369, %v609, 0
        %693 = vmatprep.subr.mxu0 0.0
        %694 = vmatpush1.msra.mxu0 0.0
        %695 = vmatprep.subr.mxu0 0.0
        %696 = vmatpush1.msra.mxu0 0.0
        %697 = vmatprep.subr.mxu0 0.0
        %698 = vmatpush1.msra.mxu0 0.0
        %699 = vmatprep.subr.mxu0 0.0
        %700 = vmatpush1.msra.mxu0 0.0
        %701 = vmatprep.subr.mxu0 0.0
        %702 = vmatpush1.msra.mxu0 0.0
        %703 = vmatprep.subr.mxu0 0.0
        %704 = vmatpush1.msra.mxu0 0.0
        %705 = vmatprep.subr.mxu0 0.0
        %706 = vmatpush1.msra.mxu0 0.0
        %707 = vmatprep.subr.mxu0 0.0
        %708 = vmatpush1.msra.mxu0 0.0
        %709 = vmatprep.subr.mxu0 0.0
        %710 = vmatpush1.msra.mxu0 0.0
        %711 = vmatprep.subr.mxu0 0.0
        %712 = vmatpush1.msra.mxu0 0.0
        %713 = vmatprep.subr.mxu0 0.0
        %714 = vmatpush1.msra.mxu0 0.0
        %715 = vmatprep.subr.mxu0 0.0
        %716 = vmatpush1.msra.mxu0 0.0
        %717 = vmatprep.subr.mxu0 0.0
        %718 = vmatpush1.msra.mxu0 %v615
        %719 = vmatprep.subr.mxu0 0.0
        %720 = vmatpush1.msra.mxu0 %v614
        %721 = vmatprep.subr.mxu0 0.0
        %722 = vmatpush1.msra.mxu0 %v613
        %723 = vmatprep.subr.mxu0 0.0
        %724 = vmatpush1.msra.mxu0 %v612
        %725 = vmatprep.subr.mxu0 0.0
        %726 = vmatpush2.msra.mxu0 0.0
        %727 = vmatprep.subr.mxu0 0.0
        %728 = vmatpush2.msra.mxu0 0.0
        %729 = vmatprep.subr.mxu0 0.0
        %730 = vmatpush2.msra.mxu0 0.0
        %731 = vmatprep.subr.mxu0 0.0
        %732 = vmatpush2.msra.mxu0 0.0
        %733 = vmatprep.subr.mxu0 0.0
        %734 = vmatpush2.msra.mxu0 0.0
        %735 = vmatprep.subr.mxu0 0.0
        %736 = vmatpush2.msra.mxu0 0.0
        %737 = vmatprep.subr.mxu0 0.0
        %738 = vmatpush2.msra.mxu0 0.0
        %739 = vmatprep.subr.mxu0 0.0
        %740 = vmatpush2.msra.mxu0 0.0
        %741 = vmatprep.subr.mxu0 0.0
        %742 = vmatpush2.msra.mxu0 0.0
        %743 = vmatprep.subr.mxu0 0.0
        %744 = vmatpush2.msra.mxu0 0.0
        %745 = vmatprep.subr.mxu0 0.0
        %746 = vmatpush2.msra.mxu0 0.0
        %747 = vmatprep.subr.mxu0 0.0
        %748 = vmatpush2.msra.mxu0 0.0
        %749 = vmatprep.subr.mxu0 0.0
        %750 = vmatpush2.msra.mxu0 0.0
        %751 = vmatprep.subr.mxu0 0.0
        %752 = vmatpush2.msra.mxu0 0.0
        %753 = vmatprep.subr.mxu0 0.0
        %754 = vmatpush2.msra.mxu0 0.0
        %755 = vmatprep.subr.mxu0 0.0
        %756 = vmatpush2.msra.mxu0 0.0
        %757 = vmatprep.mubr.f32.mxu0 0.0
        %758 = vmatmul.mubr.f32.gmra.mxu0 %v691
        %v759 = vpop.f32.mrf.mxu0
        %v760 = vadd.f32 %v687, %v759
        %v761 = vpop.f32.mrf.mxu0
        %762 = vdwg.mxu0
        %v763 = vtanh.pop %v760
        %vm764 = vcmask 257024
        %765 = vst.msk [vmem:[%s355] sm:$0xf] %vm764, %v763
        %s766 = sand.u32 %s159, 1
        %s767 = scalar_lea.sflag [#allocation6], %s766
        %s768 = sand.u32 %s159, 1
        %s769 = smul.addr %s768, 4
        %s770 = scalar_lea.vmem [#allocation13], %s769
        %s771 = sand.u32 %s185, 1
        %s772 = scalar_lea.sflag [#allocation15], %s771
        %s773 = sand.u32 %s185, 1
        %s774 = smul.addr %s773, 4
        %s775 = scalar_lea.vmem [#allocation14], %s774
        // Predicated region
        $region61: #{tpu_custom_call.1} parent=39 // pred_check
          %p776 = pneg %p169
        $region62: #{tpu_custom_call.1} parent=39 // pred_check_branch
          %778 = sbr.rel (%p776) target = $region64
        $region63: #{tpu_custom_call.1} parent=39 // pred_region
          %s780 = ssub.s32 64, 64
          %781 = vsyncadd %s767, %s780
          %s782 = smul.addr %s36, 64
          %s783 = scalar_lea.hbm %s6, %s782
          %s785 = sshll.u32 %s770, 4
          %s786 = int_to_ptr.vmem [resolvable:$true] %s785
          %788 = dma.vmem_to_hbm [thread:$0]  %s786, 64, %s783, %s767
        $region64: #{tpu_custom_call.1} parent=39 // pred_fallthru
          _
        // Predicated region
        $region65: #{tpu_custom_call.1} parent=39 // pred_check
          %p789 = pneg %p195
        $region66: #{tpu_custom_call.1} parent=39 // pred_check_branch
          %791 = sbr.rel (%p789) target = $region68
        $region67: #{tpu_custom_call.1} parent=39 // pred_region
          %s793 = ssub.s32 64, 64
          %794 = vsyncadd %s772, %s793
          %s795 = smul.addr %s36, 64
          %s796 = scalar_lea.hbm %s7, %s795
          %s798 = sshll.u32 %s775, 4
          %s799 = int_to_ptr.vmem [resolvable:$true] %s798
          %801 = dma.vmem_to_hbm [thread:$0]  %s799, 64, %s796, %s772
        $region68: #{tpu_custom_call.1} parent=39 // pred_fallthru
          _
      $region40: #{tpu_custom_call.1} parent=5 // pred_fallthru
        _
      %p802 = scmp.le.s32.totalorder 2, %s31
      // Predicated region
      $region69: #{tpu_custom_call.1} parent=5 // pred_check
        %p803 = pneg %p802
      $region70: #{tpu_custom_call.1} parent=5 // pred_check_branch
        %805 = sbr.rel (%p803) target = $region72
      $region71: #{tpu_custom_call.1} parent=5 // pred_region
        %s806 = ssub.s32 %s31, 2
        // Predicated region
        $region73: #{tpu_custom_call.1} parent=71 // pred_check
          %p807 = pneg %p175
        $region74: #{tpu_custom_call.1} parent=71 // pred_check_branch
          %809 = sbr.rel (%p807) target = $region76
        $region75: #{tpu_custom_call.1} parent=71 // pred_region
          %s810 = sand.u32 %s160, 1
          %s811 = scalar_lea.sflag [#allocation6], %s810
          %s812 = sand.u32 %s160, 1
          %s813 = smul.addr %s812, 4
          %s814 = scalar_lea.vmem [#allocation13], %s813
          %815 = dma.done %s811, 64
        $region76: #{tpu_custom_call.1} parent=71 // pred_fallthru
          _
        // Predicated region
        $region77: #{tpu_custom_call.1} parent=71 // pred_check
          %p816 = pneg %p201
        $region78: #{tpu_custom_call.1} parent=71 // pred_check_branch
          %818 = sbr.rel (%p816) target = $region80
        $region79: #{tpu_custom_call.1} parent=71 // pred_region
          %s819 = sand.u32 %s186, 1
          %s820 = scalar_lea.sflag [#allocation15], %s819
          %s821 = sand.u32 %s186, 1
          %s822 = smul.addr %s821, 4
          %s823 = scalar_lea.vmem [#allocation14], %s822
          %824 = dma.done %s820, 64
        $region80: #{tpu_custom_call.1} parent=71 // pred_fallthru
          _
      $region72: #{tpu_custom_call.1} parent=5 // pred_fallthru
        _
    $region6: #{tpu_custom_call.1} parent=1 // loop_footer
      %s35 = sadd.s32 1, %s31
    $region7: #{tpu_custom_call.1} parent=1 // loop_footer_branch
      %30 = sbr.rel target = $region3
    $region8: #{tpu_custom_call.1} parent=1 // loop_exit
      _
    %825 = vsyncpa [#allocation5], 1
    %s826 = scalar_lea.sflag [#allocation5], 1
    %827 = vsyncpa %s826, 1
    %828 = vsyncpa [#allocation8], 1
    %s829 = scalar_lea.sflag [#allocation8], 1
    %830 = vsyncpa %s829, 1
    %831 = vsyncpa [#allocation11], 1
    %832 = vsyncpa [#allocation6], 1
    %s833 = scalar_lea.sflag [#allocation6], 1
    %834 = vsyncpa %s833, 1
    %835 = vsyncpa [#allocation15], 1
    %s836 = scalar_lea.sflag [#allocation15], 1
    %837 = vsyncpa %s836, 1

</llo_original>
